<compile_context>
chip_gen: v6e
topology: v6e:2x2x1
jax: 0.10.0
libtpu: 0.0.40
codegen_flags: <defaults>
</compile_context>

<pallas_src>
import functools
import math

import jax
import jax.numpy as jnp
from jax.experimental import pallas as pl
from jax.experimental.pallas import tpu as pltpu


# ----------------------------------------------------------------------------
# helpers
# ----------------------------------------------------------------------------
def _pick_tile(n: int, target: int, align: int) -> int:
    """Largest tile <= target that divides n and is a multiple of `align`;
    falls back to the full dimension (always BlockSpec-legal)."""
    if n <= target:
        return n
    if n % align == 0:
        t = (target // align) * align
        while t >= align:
            if n % t == 0:
                return t
            t -= align
    return n


def _sublane_align(dtype) -> int:
    return 16 if jnp.dtype(dtype) == jnp.dtype(jnp.bfloat16) else 8


def _vmem_limit_bytes() -> int:
    """Generation-aware scoped-VMEM limit: ~3/4 of physical VMEM, <= 64 MiB.
    v5e/v6e (128 MiB physical) -> 64 MiB; v7x (64 MiB physical) -> 48 MiB."""
    try:
        cap = int(pltpu.get_tpu_info().vmem_capacity_bytes)
    except Exception:
        return 48 << 20
    return int(min(64 << 20, (cap * 3) // 4))


def _rotate_every_two(x):
    x1 = x[..., ::2]
    x2 = x[..., 1::2]
    return jnp.stack((-x2, x1), axis=-1).reshape(x.shape)


# ----------------------------------------------------------------------------
# Kernel 1: tiled matmul (fused Q/K/V/G projection and output projection)
# ----------------------------------------------------------------------------
def _matmul_kernel(a_ref, b_ref, o_ref, acc_ref):
    @pl.when(pl.program_id(2) == 0)
    def _():
        acc_ref[...] = jnp.zeros_like(acc_ref)

    acc_ref[...] += jnp.dot(a_ref[...], b_ref[...],
                            preferred_element_type=jnp.float32)

    @pl.when(pl.program_id(2) == pl.num_programs(2) - 1)
    def _():
        o_ref[...] = acc_ref[...].astype(o_ref.dtype)


def pallas_matmul(a, b, out_dtype=None):
    M, K = a.shape
    K2, N = b.shape
    assert K == K2
    out_dtype = out_dtype or a.dtype
    tm = _pick_tile(M, 256, _sublane_align(a.dtype))
    tn = _pick_tile(N, 256, 128)
    tk = _pick_tile(K, 512, 128)
    grid = (M // tm, N // tn, K // tk)
    return pl.pallas_call(
        _matmul_kernel,
        out_shape=jax.ShapeDtypeStruct((M, N), out_dtype),
        grid_spec=pltpu.PrefetchScalarGridSpec(
            num_scalar_prefetch=0,
            grid=grid,
            in_specs=[
                pl.BlockSpec((tm, tk), lambda i, j, k: (i, k)),
                pl.BlockSpec((tk, tn), lambda i, j, k: (k, j)),
            ],
            out_specs=pl.BlockSpec((tm, tn), lambda i, j, k: (i, j)),
            scratch_shapes=[pltpu.VMEM((tm, tn), jnp.float32)],
        ),
        compiler_params=pltpu.CompilerParams(
            dimension_semantics=("parallel", "parallel", "arbitrary"),
            vmem_limit_bytes=_vmem_limit_bytes(),
        ),
    )(a, b)


# ----------------------------------------------------------------------------
# Kernel 2: flash-tiled retention + in-kernel decay mask + per-head RMSNorm
#           + fused swish gate.  Output is written directly as (B, T, V).
# ----------------------------------------------------------------------------
def _retention_kernel(q_ref, k_ref, v_ref, g_ref, lg_ref, o_ref,
                      acc_ref, den_ref, *,
                      num_heads, key_dim, head_dim, t_q, t_k, eps):
    qi = pl.program_id(1)
    ki = pl.program_id(2)
    q_start = qi * t_q
    k_start = ki * t_k

    @pl.when(ki == 0)
    def _init():
        acc_ref[...] = jnp.zeros_like(acc_ref)
        den_ref[...] = jnp.zeros_like(den_ref)

    # Skip KV blocks that are entirely in the future (fully masked).
    @pl.when(k_start < q_start + t_q)
    def _accumulate():
        q_all = q_ref[0]                              # (t_q, nh*key_dim)
        k_all = k_ref[0]                              # (t_k, nh*key_dim)
        v_all = v_ref[0]                              # (t_k, nh*head_dim)

        # absolute query / key positions of this tile -> causal decay mask
        row = jax.lax.broadcasted_iota(jnp.int32, (t_q, t_k), 0)
        col = jax.lax.broadcasted_iota(jnp.int32, (t_q, t_k), 1)
        n = q_start + row
        m = k_start + col
        causal = n >= m
        diff = jnp.where(causal, (n - m).astype(jnp.float32), 0.0)

        for h in range(num_heads):
            log_gamma_h = lg_ref[h]                   # scalar f32 from SMEM
            decay = jnp.where(causal, jnp.exp(diff * log_gamma_h), 0.0)

            q_h = q_all[:, h * key_dim:(h + 1) * key_dim]
            k_h = k_all[:, h * key_dim:(h + 1) * key_dim]
            v_h = v_all[:, h * head_dim:(h + 1) * head_dim]

            s = jax.lax.dot_general(q_h, k_h, (((1,), (1,)), ((), ())),
                                    preferred_element_type=jnp.float32)
            s = s * decay
            den_ref[h] += jnp.sum(jnp.abs(s), axis=-1, keepdims=True)
            acc_ref[h] += jnp.dot(s.astype(v_h.dtype), v_h,
                                  preferred_element_type=jnp.float32)

    @pl.when(ki == pl.num_programs(2) - 1)
    def _epilogue():
        g_all = g_ref[0].astype(jnp.float32)          # (t_q, nh*head_dim)
        pieces = []
        for h in range(num_heads):
            denom = jnp.clip(den_ref[h], 1.0, 5e4)    # (t_q, 1)
            o_h = acc_ref[h] / denom                  # (t_q, head_dim) f32
            ms = jnp.mean(o_h * o_h, axis=-1, keepdims=True)
            o_h = o_h * jax.lax.rsqrt(ms + eps)       # RMSNorm (no affine)
            g_h = g_all[:, h * head_dim:(h + 1) * head_dim]
            pieces.append(g_h * jax.nn.sigmoid(g_h) * o_h)   # silu(g)*normed
        o_ref[0] = jnp.concatenate(pieces, axis=-1).astype(o_ref.dtype)


def retention_gated(qr, kr, v, g, log_gamma, *, num_heads, key_dim, head_dim, eps):
    B, T, H = qr.shape
    V = num_heads * head_dim
    align = _sublane_align(qr.dtype)
    t_q = _pick_tile(T, 256, align)
    t_k = _pick_tile(T, 256, align)
    grid = (B, T // t_q, T // t_k)
    kernel = functools.partial(
        _retention_kernel, num_heads=num_heads, key_dim=key_dim,
        head_dim=head_dim, t_q=t_q, t_k=t_k, eps=eps)
    return pl.pallas_call(
        kernel,
        out_shape=jax.ShapeDtypeStruct((B, T, V), qr.dtype),
        grid_spec=pltpu.PrefetchScalarGridSpec(
            num_scalar_prefetch=0,
            grid=grid,
            in_specs=[
                pl.BlockSpec((1, t_q, H), lambda b, qi, ki: (b, qi, 0)),
                pl.BlockSpec((1, t_k, H), lambda b, qi, ki: (b, ki, 0)),
                pl.BlockSpec((1, t_k, V), lambda b, qi, ki: (b, ki, 0)),
                pl.BlockSpec((1, t_q, V), lambda b, qi, ki: (b, qi, 0)),
                pl.BlockSpec(memory_space=pltpu.MemorySpace.SMEM),
            ],
            out_specs=pl.BlockSpec((1, t_q, V), lambda b, qi, ki: (b, qi, 0)),
            scratch_shapes=[
                pltpu.VMEM((num_heads, t_q, head_dim), jnp.float32),  # O acc
                pltpu.VMEM((num_heads, t_q, 1), jnp.float32),         # sum|S|
            ],
        ),
        compiler_params=pltpu.CompilerParams(
            dimension_semantics=("parallel", "parallel", "arbitrary"),
            vmem_limit_bytes=_vmem_limit_bytes(),
        ),
    )(qr, kr, v, g, log_gamma)


# ----------------------------------------------------------------------------
# MultiScaleRetention forward (parallel path, training mode -> no cache)
# ----------------------------------------------------------------------------
def multiscale_retention_forward(params, hidden_states, sin, cos, gamma,
                                 *, num_heads, eps):
    """params = (w_qkvg, w_o); w_qkvg = concat([Wq, Wk, Wv, Wg], axis=1)
    fused once OUTSIDE jit.  Weights stored as (in_features, out_features)."""
    w_qkvg, w_o = params
    B, T, H = hidden_states.shape
    V = w_o.shape[0]
    key_dim = H // num_heads
    head_dim = V // num_heads
    scaling = key_dim ** -0.5
    cdt = hidden_states.dtype            # compute dtype follows the inputs

    # fused q/k/v/g projection: one MXU pass over the activations
    qkvg = pallas_matmul(hidden_states.reshape(B * T, H), w_qkvg.astype(cdt))
    q, k, v, g = jnp.split(qkvg, [H, 2 * H, 2 * H + V], axis=1)
    v = v.reshape(B, T, V)
    g = g.reshape(B, T, V)

    # rotary (theta_shift) + key scaling; heads stay packed in the channel dim
    sin_ = sin.astype(cdt)[None, :, None, :]
    cos_ = cos.astype(cdt)[None, :, None, :]
    q4 = q.reshape(B, T, num_heads, key_dim)
    k4 = k.reshape(B, T, num_heads, key_dim) * jnp.asarray(scaling, cdt)
    qr = (q4 * cos_ + _rotate_every_two(q4) * sin_).reshape(B, T, H)
    kr = (k4 * cos_ + _rotate_every_two(k4) * sin_).reshape(B, T, H)

    log_gamma = jnp.log(gamma.astype(jnp.float32))        # (num_heads,)

    # retention + per-head RMSNorm + swish gate, written directly as (B, T, V)
    gated = retention_gated(qr, kr, v, g, log_gamma, num_heads=num_heads,
                            key_dim=key_dim, head_dim=head_dim, eps=eps)

    out = pallas_matmul(gated.reshape(B * T, V), w_o.astype(cdt),
                        out_dtype=hidden_states.dtype)
    return out.reshape(B, T, H)


# ----------------------------------------------------------------------------
# pure-JAX reference (mirrors the PyTorch module, parallel path)
# ----------------------------------------------------------------------------
def _split_heads(t, B, T, nh, d):
    return t.reshape(B, T, nh, d).transpose(0, 2, 1, 3)


def reference_forward(weights, x, sin, cos, decay_mask, *, num_heads, eps):
    Wq, Wk, Wv, Wg, Wo = weights
    B, T, H = x.shape
    V = Wv.shape[1]
    key_dim = H // num_heads
    head_dim = V // num_heads
    scaling = key_dim ** -0.5
    hp = jax.lax.Precision.HIGHEST

    q = jnp.dot(x, Wq, precision=hp)
    k = jnp.dot(x, Wk, precision=hp)
    v = jnp.dot(x, Wv, precision=hp)
    g = jnp.dot(x, Wg, precision=hp)

    q = _split_heads(q, B, T, num_heads, key_dim)
    k = _split_heads(k, B, T, num_heads, key_dim) * scaling
    v = _split_heads(v, B, T, num_heads, head_dim)

    qr = q * cos + _rotate_every_two(q) * sin
    kr = k * cos + _rotate_every_two(k) * sin

    ret = jnp.einsum("bhqd,bhkd->bhqk", qr, kr, precision=hp)
    ret = ret * decay_mask
    denom = jnp.clip(jnp.sum(jnp.abs(ret), axis=-1, keepdims=True), 1.0, 5e4)
    ret = ret / denom
    out = jnp.einsum("bhqk,bhkd->bhqd", ret, v, precision=hp)
    out = out.transpose(0, 2, 1, 3)                        # (B, T, nh, Dv)

    of = out.astype(jnp.float32)
    normed = of * jax.lax.rsqrt(jnp.mean(of * of, axis=-1, keepdims=True) + eps)
    normed = normed.astype(out.dtype).reshape(B, T, V)

    o = jax.nn.silu(g) * normed
    return jnp.dot(o, Wo, precision=hp)


# ----------------------------------------------------------------------------
if __name__ == "__main__":
    key = jax.random.PRNGKey(0)
    B, T = 2, 8
    embed_dim, value_dim, num_heads = 32, 32, 4
    key_dim = embed_dim // num_heads     # 8
    eps = 1e-6

    keys = jax.random.split(key, 6)

    def xavier(k, shape, gain):
        fan_in, fan_out = shape
        bound = gain * math.sqrt(6.0 / (fan_in + fan_out))
        return jax.random.uniform(k, shape, jnp.float32, -bound, bound)

    # weights stored as (in_features, out_features) so forward is x @ W
    Wq = xavier(keys[0], (embed_dim, embed_dim), 2.0 ** -2.5)
    Wk = xavier(keys[1], (embed_dim, embed_dim), 2.0 ** -2.5)
    Wv = xavier(keys[2], (embed_dim, value_dim), 2.0 ** -2.5)
    Wg = xavier(keys[3], (embed_dim, value_dim), 2.0 ** -2.5)
    Wo = xavier(keys[4], (value_dim, embed_dim), 2.0 ** -1)

    # fused projection weight, concatenated once OUTSIDE the jitted forward
    w_qkvg = jnp.concatenate([Wq, Wk, Wv, Wg], axis=1)     # (H, 2H + 2V)

    x = jax.random.normal(keys[5], (B, T, embed_dim), dtype=jnp.float32)

    # rotary sin/cos (T, key_dim) and RetNet per-head decay gammas
    pos = jnp.arange(T, dtype=jnp.float32)
    inv_freq = 1.0 / (10000.0 ** (jnp.arange(0, key_dim, 2, dtype=jnp.float32) / key_dim))
    angle = jnp.repeat(pos[:, None] * inv_freq[None, :], 2, axis=-1)   # (T, key_dim)
    sin, cos = jnp.sin(angle), jnp.cos(angle)

    gamma = 1.0 - 2.0 ** (-5.0 - jnp.arange(num_heads, dtype=jnp.float32))

    # reference decay mask (the kernel regenerates this in-VMEM from log(gamma))
    n_idx = jnp.arange(T)[:, None]
    m_idx = jnp.arange(T)[None, :]
    expnt = (n_idx - m_idx).astype(jnp.float32)
    causal = n_idx >= m_idx
    decay_mask = jnp.where(causal[None], gamma[:, None, None] ** expnt[None], 0.0)
    decay_mask = decay_mask[None]                                       # (1, nh, T, T)

    fwd = jax.jit(functools.partial(multiscale_retention_forward,
                                    num_heads=num_heads, eps=eps))

    # --- float32 run: strict check against the f32 reference ----------------
    out = jax.block_until_ready(fwd((w_qkvg, Wo), x, sin, cos, gamma))
    ref = reference_forward((Wq, Wk, Wv, Wg, Wo), x, sin, cos, decay_mask,
                            num_heads=num_heads, eps=eps)
    assert out.shape == (B, T, embed_dim) and out.dtype == x.dtype
    max_err = float(jnp.max(jnp.abs(out - ref)))
    assert jnp.allclose(out, ref, atol=2e-3, rtol=2e-3), f"f32 max_err={max_err}"

    # --- bfloat16 run: native MXU path (f32 accumulation), looser tolerance -
    bf = jnp.bfloat16
    out_bf = jax.block_until_ready(
        fwd((w_qkvg.astype(bf), Wo.astype(bf)), x.astype(bf), sin, cos, gamma))
    assert out_bf.shape == (B, T, embed_dim) and out_bf.dtype == bf
    max_err_bf = float(jnp.max(jnp.abs(out_bf.astype(jnp.float32) - ref)))
    assert jnp.allclose(out_bf.astype(jnp.float32), ref,
                        atol=2e-2, rtol=2e-2), f"bf16 max_err={max_err_bf}"

    print("KERNEL_OK")
</pallas_src>

<mosaic_0001>
module attributes {stable_mosaic.version = 11 : i64} {
  func.func @_matmul_kernel(%arg0: i32, %arg1: i32, %arg2: i32, %arg3: memref<16x32xf32, #tpu.memory_space<vmem>>, %arg4: memref<32x128xf32, #tpu.memory_space<vmem>>, %arg5: memref<16x128xf32, #tpu.memory_space<vmem>>, %arg6: memref<16x128xf32, #tpu.memory_space<vmem>>) attributes {dimension_semantics = [#tpu.dimension_semantics<parallel>, #tpu.dimension_semantics<parallel>, #tpu.dimension_semantics<arbitrary>], iteration_bounds = array<i64: 1, 1, 1>, scalar_prefetch = 0 : i64, scratch_operands = 1 : i64, tpu.core_type = #tpu.core_type<tc>, window_params = [{transform_indices = @transform_0, window_bounds = array<i64: 16, 32>}, {transform_indices = @transform_1, window_bounds = array<i64: 32, 128>}, {transform_indices = @transform_2, window_bounds = array<i64: 16, 128>}]} {
    %c0_i32 = arith.constant 0 : i32
    %0 = arith.cmpi eq, %arg2, %c0_i32 : i32
    %1 = arith.extui %0 : i1 to i32
    %c0_i32_0 = arith.constant 0 : i32
    %2 = arith.cmpi ne, %1, %c0_i32_0 : i32
    scf.if %2 {
      %cst_10 = arith.constant 0.000000e+00 : f32
      %12 = vector.broadcast %cst_10 : f32 to vector<16x128xf32>
      %c0_11 = arith.constant 0 : index
      %c0_12 = arith.constant 0 : index
      %13 = vector.load %arg6[%c0_11, %c0_12] : memref<16x128xf32, #tpu.memory_space<vmem>>, vector<16x128xf32>
      tpu.vector_store %arg6[%c0_11, %c0_12], %12 {strides = array<i32>} : memref<16x128xf32, #tpu.memory_space<vmem>>, vector<16x128xf32>,
    } else {
    }
    %c0 = arith.constant 0 : index
    %c0_1 = arith.constant 0 : index
    %3 = vector.load %arg6[%c0, %c0_1] : memref<16x128xf32, #tpu.memory_space<vmem>>, vector<16x128xf32>
    %c0_2 = arith.constant 0 : index
    %c0_3 = arith.constant 0 : index
    %4 = vector.load %arg3[%c0_2, %c0_3] : memref<16x32xf32, #tpu.memory_space<vmem>>, vector<16x32xf32>
    %c0_4 = arith.constant 0 : index
    %c0_5 = arith.constant 0 : index
    %5 = vector.load %arg4[%c0_4, %c0_5] : memref<32x128xf32, #tpu.memory_space<vmem>>, vector<32x128xf32>
    %cst = arith.constant dense<0.000000e+00> : vector<16x128xf32>
    %6 = tpu.matmul %4, %5, %cst {dimension_numbers = #tpu.dot_dimension_numbers<[1], [0], [0], [1], [0, 0, 1, 1], [], []>} : vector<16x32xf32>, vector<32x128xf32>, vector<16x128xf32> -> vector<16x128xf32>
    %7 = arith.addf %3, %6 : vector<16x128xf32>
    %c0_6 = arith.constant 0 : index
    %c0_7 = arith.constant 0 : index
    %8 = vector.load %arg6[%c0_6, %c0_7] : memref<16x128xf32, #tpu.memory_space<vmem>>, vector<16x128xf32>
    tpu.vector_store %arg6[%c0_6, %c0_7], %7 {strides = array<i32>} : memref<16x128xf32, #tpu.memory_space<vmem>>, vector<16x128xf32>,
    %c0_i32_8 = arith.constant 0 : i32
    %9 = arith.cmpi eq, %arg2, %c0_i32_8 : i32
    %10 = arith.extui %9 : i1 to i32
    %c0_i32_9 = arith.constant 0 : i32
    %11 = arith.cmpi ne, %10, %c0_i32_9 : i32
    scf.if %11 {
      %c0_10 = arith.constant 0 : index
      %c0_11 = arith.constant 0 : index
      %12 = vector.load %arg6[%c0_10, %c0_11] : memref<16x128xf32, #tpu.memory_space<vmem>>, vector<16x128xf32>
      %c0_12 = arith.constant 0 : index
      %c0_13 = arith.constant 0 : index
      %13 = vector.load %arg5[%c0_12, %c0_13] : memref<16x128xf32, #tpu.memory_space<vmem>>, vector<16x128xf32>
      tpu.vector_store %arg5[%c0_12, %c0_13], %12 {strides = array<i32>} : memref<16x128xf32, #tpu.memory_space<vmem>>, vector<16x128xf32>,
    } else {
    }
    return
  }
  func.func @transform_0(%arg0: i32, %arg1: i32, %arg2: i32) -> (i32, i32) {
    %c0_i32 = arith.constant 0 : i32
    return %arg0, %arg2 : i32, i32
  }
  func.func @transform_1(%arg0: i32, %arg1: i32, %arg2: i32) -> (i32, i32) {
    %c0_i32 = arith.constant 0 : i32
    return %arg2, %arg1 : i32, i32
  }
  func.func @transform_2(%arg0: i32, %arg1: i32, %arg2: i32) -> (i32, i32) {
    %c0_i32 = arith.constant 0 : i32
    return %arg0, %arg1 : i32, i32
  }
}

module attributes {stable_mosaic.version = 11 : i64} {
  func.func @_matmul_kernel(%arg0: i32, %arg1: i32, %arg2: i32, %arg3: memref<16x32xf32, #tpu.memory_space<vmem>>, %arg4: memref<32x32xf32, #tpu.memory_space<vmem>>, %arg5: memref<16x32xf32, #tpu.memory_space<vmem>>, %arg6: memref<16x32xf32, #tpu.memory_space<vmem>>) attributes {dimension_semantics = [#tpu.dimension_semantics<parallel>, #tpu.dimension_semantics<parallel>, #tpu.dimension_semantics<arbitrary>], iteration_bounds = array<i64: 1, 1, 1>, scalar_prefetch = 0 : i64, scratch_operands = 1 : i64, tpu.core_type = #tpu.core_type<tc>, window_params = [{transform_indices = @transform_0, window_bounds = array<i64: 16, 32>}, {transform_indices = @transform_1, window_bounds = array<i64: 32, 32>}, {transform_indices = @transform_2, window_bounds = array<i64: 16, 32>}]} {
    %c0_i32 = arith.constant 0 : i32
    %0 = arith.cmpi eq, %arg2, %c0_i32 : i32
    %1 = arith.extui %0 : i1 to i32
    %c0_i32_0 = arith.constant 0 : i32
    %2 = arith.cmpi ne, %1, %c0_i32_0 : i32
    scf.if %2 {
      %cst_10 = arith.constant 0.000000e+00 : f32
      %12 = vector.broadcast %cst_10 : f32 to vector<16x32xf32>
      %c0_11 = arith.constant 0 : index
      %c0_12 = arith.constant 0 : index
      %13 = vector.load %arg6[%c0_11, %c0_12] : memref<16x32xf32, #tpu.memory_space<vmem>>, vector<16x32xf32>
      tpu.vector_store %arg6[%c0_11, %c0_12], %12 {strides = array<i32>} : memref<16x32xf32, #tpu.memory_space<vmem>>, vector<16x32xf32>,
    } else {
    }
    %c0 = arith.constant 0 : index
    %c0_1 = arith.constant 0 : index
    %3 = vector.load %arg6[%c0, %c0_1] : memref<16x32xf32, #tpu.memory_space<vmem>>, vector<16x32xf32>
    %c0_2 = arith.constant 0 : index
    %c0_3 = arith.constant 0 : index
    %4 = vector.load %arg3[%c0_2, %c0_3] : memref<16x32xf32, #tpu.memory_space<vmem>>, vector<16x32xf32>
    %c0_4 = arith.constant 0 : index
    %c0_5 = arith.constant 0 : index
    %5 = vector.load %arg4[%c0_4, %c0_5] : memref<32x32xf32, #tpu.memory_space<vmem>>, vector<32x32xf32>
    %cst = arith.constant dense<0.000000e+00> : vector<16x32xf32>
    %6 = tpu.matmul %4, %5, %cst {dimension_numbers = #tpu.dot_dimension_numbers<[1], [0], [0], [1], [0, 0, 1, 1], [], []>} : vector<16x32xf32>, vector<32x32xf32>, vector<16x32xf32> -> vector<16x32xf32>
    %7 = arith.addf %3, %6 : vector<16x32xf32>
    %c0_6 = arith.constant 0 : index
    %c0_7 = arith.constant 0 : index
    %8 = vector.load %arg6[%c0_6, %c0_7] : memref<16x32xf32, #tpu.memory_space<vmem>>, vector<16x32xf32>
    tpu.vector_store %arg6[%c0_6, %c0_7], %7 {strides = array<i32>} : memref<16x32xf32, #tpu.memory_space<vmem>>, vector<16x32xf32>,
    %c0_i32_8 = arith.constant 0 : i32
    %9 = arith.cmpi eq, %arg2, %c0_i32_8 : i32
    %10 = arith.extui %9 : i1 to i32
    %c0_i32_9 = arith.constant 0 : i32
    %11 = arith.cmpi ne, %10, %c0_i32_9 : i32
    scf.if %11 {
      %c0_10 = arith.constant 0 : index
      %c0_11 = arith.constant 0 : index
      %12 = vector.load %arg6[%c0_10, %c0_11] : memref<16x32xf32, #tpu.memory_space<vmem>>, vector<16x32xf32>
      %c0_12 = arith.constant 0 : index
      %c0_13 = arith.constant 0 : index
      %13 = vector.load %arg5[%c0_12, %c0_13] : memref<16x32xf32, #tpu.memory_space<vmem>>, vector<16x32xf32>
      tpu.vector_store %arg5[%c0_12, %c0_13], %12 {strides = array<i32>} : memref<16x32xf32, #tpu.memory_space<vmem>>, vector<16x32xf32>,
    } else {
    }
    return
  }
  func.func @transform_0(%arg0: i32, %arg1: i32, %arg2: i32) -> (i32, i32) {
    %c0_i32 = arith.constant 0 : i32
    return %arg0, %arg2 : i32, i32
  }
  func.func @transform_1(%arg0: i32, %arg1: i32, %arg2: i32) -> (i32, i32) {
    %c0_i32 = arith.constant 0 : i32
    return %arg2, %arg1 : i32, i32
  }
  func.func @transform_2(%arg0: i32, %arg1: i32, %arg2: i32) -> (i32, i32) {
    %c0_i32 = arith.constant 0 : i32
    return %arg0, %arg1 : i32, i32
  }
}

module attributes {stable_mosaic.version = 11 : i64} {
  func.func @_retention_kernel(%arg0: i32, %arg1: i32, %arg2: i32, %arg3: memref<1x8x32xf32, #tpu.memory_space<vmem>>, %arg4: memref<1x8x32xf32, #tpu.memory_space<vmem>>, %arg5: memref<1x8x32xf32, #tpu.memory_space<vmem>>, %arg6: memref<1x8x32xf32, #tpu.memory_space<vmem>>, %arg7: memref<4xf32, #tpu.memory_space<smem>>, %arg8: memref<1x8x32xf32, #tpu.memory_space<vmem>>, %arg9: memref<4x8x8xf32, #tpu.memory_space<vmem>>, %arg10: memref<4x8x1xf32, #tpu.memory_space<vmem>>) attributes {dimension_semantics = [#tpu.dimension_semantics<parallel>, #tpu.dimension_semantics<parallel>, #tpu.dimension_semantics<arbitrary>], iteration_bounds = array<i64: 2, 1, 1>, scalar_prefetch = 0 : i64, scratch_operands = 2 : i64, tpu.core_type = #tpu.core_type<tc>, window_params = [{transform_indices = @transform_0, window_bounds = array<i64: 1, 8, 32>}, {transform_indices = @transform_1, window_bounds = array<i64: 1, 8, 32>}, {transform_indices = @transform_2, window_bounds = array<i64: 1, 8, 32>}, {transform_indices = @transform_3, window_bounds = array<i64: 1, 8, 32>}, {transform_indices = @transform_4, window_bounds = array<i64: 4>}, {transform_indices = @transform_5, window_bounds = array<i64: 1, 8, 32>}]} {
    %c8_i32 = arith.constant 8 : i32
    %0 = arith.muli %arg1, %c8_i32 : i32
    %c8_i32_0 = arith.constant 8 : i32
    %1 = arith.muli %arg2, %c8_i32_0 : i32
    %c0_i32 = arith.constant 0 : i32
    %2 = arith.cmpi eq, %arg2, %c0_i32 : i32
    %3 = arith.extui %2 : i1 to i32
    %c0_i32_1 = arith.constant 0 : i32
    %4 = arith.cmpi ne, %3, %c0_i32_1 : i32
    scf.if %4 {
      %cst = arith.constant 0.000000e+00 : f32
      %12 = vector.broadcast %cst : f32 to vector<4x8x8xf32>
      %c0 = arith.constant 0 : index
      %c0_6 = arith.constant 0 : index
      %c0_7 = arith.constant 0 : index
      %13 = vector.load %arg9[%c0, %c0_6, %c0_7] : memref<4x8x8xf32, #tpu.memory_space<vmem>>, vector<4x8x8xf32>
      tpu.vector_store %arg9[%c0, %c0_6, %c0_7], %12 {strides = array<i32>} : memref<4x8x8xf32, #tpu.memory_space<vmem>>, vector<4x8x8xf32>,
      %cst_8 = arith.constant 0.000000e+00 : f32
      %14 = vector.broadcast %cst_8 : f32 to vector<4x8x1xf32>
      %c0_9 = arith.constant 0 : index
      %c0_10 = arith.constant 0 : index
      %c0_11 = arith.constant 0 : index
      %15 = vector.load %arg10[%c0_9, %c0_10, %c0_11] : memref<4x8x1xf32, #tpu.memory_space<vmem>>, vector<4x8x1xf32>
      tpu.vector_store %arg10[%c0_9, %c0_10, %c0_11], %14 {strides = array<i32>} : memref<4x8x1xf32, #tpu.memory_space<vmem>>, vector<4x8x1xf32>,
    } else {
    }
    %c8_i32_2 = arith.constant 8 : i32
    %5 = arith.addi %0, %c8_i32_2 : i32
    %6 = arith.cmpi slt, %1, %5 : i32
    %7 = arith.extui %6 : i1 to i32
    %c0_i32_3 = arith.constant 0 : i32
    %8 = arith.cmpi ne, %7, %c0_i32_3 : i32
    scf.if %8 {
      %c0 = arith.constant 0 : index
      %c0_6 = arith.constant 0 : index
      %c0_7 = arith.constant 0 : index
      %12 = vector.load %arg3[%c0, %c0_6, %c0_7] : memref<1x8x32xf32, #tpu.memory_space<vmem>>, vector<1x8x32xf32>
      %13 = vector.shape_cast %12 : vector<1x8x32xf32> to vector<8x32xf32>
      %c0_8 = arith.constant 0 : index
      %c0_9 = arith.constant 0 : index
      %c0_10 = arith.constant 0 : index
      %14 = vector.load %arg4[%c0_8, %c0_9, %c0_10] : memref<1x8x32xf32, #tpu.memory_space<vmem>>, vector<1x8x32xf32>
      %15 = vector.shape_cast %14 : vector<1x8x32xf32> to vector<8x32xf32>
      %c0_11 = arith.constant 0 : index
      %c0_12 = arith.constant 0 : index
      %c0_13 = arith.constant 0 : index
      %16 = vector.load %arg5[%c0_11, %c0_12, %c0_13] : memref<1x8x32xf32, #tpu.memory_space<vmem>>, vector<1x8x32xf32>
      %17 = vector.shape_cast %16 : vector<1x8x32xf32> to vector<8x32xf32>
      %18 = tpu.iota {dimensions = array<i32: 0>} : vector<8x8xi32>
      %19 = tpu.iota {dimensions = array<i32: 1>} : vector<8x8xi32>
      %20 = vector.broadcast %0 : i32 to vector<8x8xi32>
      %21 = arith.addi %20, %18 : vector<8x8xi32>
      %22 = vector.broadcast %1 : i32 to vector<8x8xi32>
      %23 = arith.addi %22, %19 : vector<8x8xi32>
      %24 = arith.cmpi sge, %21, %23 : vector<8x8xi32>
      %25 = arith.subi %21, %23 : vector<8x8xi32>
      %26 = arith.sitofp %25 : vector<8x8xi32> to vector<8x8xf32>
      %cst = arith.constant 0.000000e+00 : f32
      %27 = vector.broadcast %cst : f32 to vector<8x8xf32>
      %28 = arith.select %24, %26, %27 : vector<8x8xi1>, vector<8x8xf32>
      %c0_14 = arith.constant 0 : index
      %29 = memref.load %arg7[%c0_14] : memref<4xf32, #tpu.memory_space<smem>>
      %30 = vector.broadcast %29 : f32 to vector<8x8xf32>
      %31 = arith.mulf %28, %30 : vector<8x8xf32>
      %32 = math.exp %31 : vector<8x8xf32>
      %cst_15 = arith.constant 0.000000e+00 : f32
      %33 = vector.broadcast %cst_15 : f32 to vector<8x8xf32>
      %34 = arith.select %24, %32, %33 : vector<8x8xi1>, vector<8x8xf32>
      %35 = vector.extract_strided_slice %13 {offsets = [0, 0], sizes = [8, 8], strides = [1, 1]} : vector<8x32xf32> to vector<8x8xf32>
      %36 = vector.extract_strided_slice %15 {offsets = [0, 0], sizes = [8, 8], strides = [1, 1]} : vector<8x32xf32> to vector<8x8xf32>
      %37 = vector.extract_strided_slice %17 {offsets = [0, 0], sizes = [8, 8], strides = [1, 1]} : vector<8x32xf32> to vector<8x8xf32>
      %cst_16 = arith.constant dense<0.000000e+00> : vector<8x8xf32>
      %38 = tpu.matmul %35, %36, %cst_16 {dimension_numbers = #tpu.dot_dimension_numbers<[1], [1], [0], [0], [0, 0, 1, 0], [], []>} : vector<8x8xf32>, vector<8x8xf32>, vector<8x8xf32> -> vector<8x8xf32>
      %39 = arith.mulf %38, %34 : vector<8x8xf32>
      %c0_17 = arith.constant 0 : index
      %c0_18 = arith.constant 0 : index
      %c0_19 = arith.constant 0 : index
      %40 = vector.load %arg10[%c0_17, %c0_18, %c0_19] : memref<4x8x1xf32, #tpu.memory_space<vmem>>, vector<1x8x1xf32>
      %41 = vector.shape_cast %40 : vector<1x8x1xf32> to vector<8x1xf32>
      %42 = math.absf %39 : vector<8x8xf32>
      %cst_20 = arith.constant dense<0.000000e+00> : vector<8xf32>
      %43 = vector.multi_reduction <add>, %42, %cst_20 [1] : vector<8x8xf32> to vector<8xf32>
      %44 = vector.shape_cast %43 : vector<8xf32> to vector<8x1xf32>
      %45 = arith.addf %41, %44 : vector<8x1xf32>
      %c0_21 = arith.constant 0 : index
      %c0_22 = arith.constant 0 : index
      %c0_23 = arith.constant 0 : index
      %46 = vector.load %arg10[%c0_21, %c0_22, %c0_23] : memref<4x8x1xf32, #tpu.memory_space<vmem>>, vector<1x8x1xf32>
      %47 = vector.shape_cast %46 : vector<1x8x1xf32> to vector<8x1xf32>
      %48 = vector.shape_cast %45 : vector<8x1xf32> to vector<1x8x1xf32>
      tpu.vector_store %arg10[%c0_21, %c0_22, %c0_23], %48 {strides = array<i32>} : memref<4x8x1xf32, #tpu.memory_space<vmem>>, vector<1x8x1xf32>,
      %c0_24 = arith.constant 0 : index
      %c0_25 = arith.constant 0 : index
      %c0_26 = arith.constant 0 : index
      %49 = vector.load %arg9[%c0_24, %c0_25, %c0_26] : memref<4x8x8xf32, #tpu.memory_space<vmem>>, vector<1x8x8xf32>
      %50 = vector.shape_cast %49 : vector<1x8x8xf32> to vector<8x8xf32>
      %cst_27 = arith.constant dense<0.000000e+00> : vector<8x8xf32>
      %51 = tpu.matmul %39, %37, %cst_27 {dimension_numbers = #tpu.dot_dimension_numbers<[1], [0], [0], [1], [0, 0, 1, 1], [], []>} : vector<8x8xf32>, vector<8x8xf32>, vector<8x8xf32> -> vector<8x8xf32>
      %52 = arith.addf %50, %51 : vector<8x8xf32>
      %c0_28 = arith.constant 0 : index
      %c0_29 = arith.constant 0 : index
      %c0_30 = arith.constant 0 : index
      %53 = vector.load %arg9[%c0_28, %c0_29, %c0_30] : memref<4x8x8xf32, #tpu.memory_space<vmem>>, vector<1x8x8xf32>
      %54 = vector.shape_cast %53 : vector<1x8x8xf32> to vector<8x8xf32>
      %55 = vector.shape_cast %52 : vector<8x8xf32> to vector<1x8x8xf32>
      tpu.vector_store %arg9[%c0_28, %c0_29, %c0_30], %55 {strides = array<i32>} : memref<4x8x8xf32, #tpu.memory_space<vmem>>, vector<1x8x8xf32>,
      %c1 = arith.constant 1 : index
      %56 = memref.load %arg7[%c1] : memref<4xf32, #tpu.memory_space<smem>>
      %57 = vector.broadcast %56 : f32 to vector<8x8xf32>
      %58 = arith.mulf %28, %57 : vector<8x8xf32>
      %59 = math.exp %58 : vector<8x8xf32>
      %cst_31 = arith.constant 0.000000e+00 : f32
      %60 = vector.broadcast %cst_31 : f32 to vector<8x8xf32>
      %61 = arith.select %24, %59, %60 : vector<8x8xi1>, vector<8x8xf32>
      %62 = vector.extract_strided_slice %13 {offsets = [0, 8], sizes = [8, 8], strides = [1, 1]} : vector<8x32xf32> to vector<8x8xf32>
      %63 = vector.extract_strided_slice %15 {offsets = [0, 8], sizes = [8, 8], strides = [1, 1]} : vector<8x32xf32> to vector<8x8xf32>
      %64 = vector.extract_strided_slice %17 {offsets = [0, 8], sizes = [8, 8], strides = [1, 1]} : vector<8x32xf32> to vector<8x8xf32>
      %cst_32 = arith.constant dense<0.000000e+00> : vector<8x8xf32>
      %65 = tpu.matmul %62, %63, %cst_32 {dimension_numbers = #tpu.dot_dimension_numbers<[1], [1], [0], [0], [0, 0, 1, 0], [], []>} : vector<8x8xf32>, vector<8x8xf32>, vector<8x8xf32> -> vector<8x8xf32>
      %66 = arith.mulf %65, %61 : vector<8x8xf32>
      %c1_33 = arith.constant 1 : index
      %c0_34 = arith.constant 0 : index
      %c0_35 = arith.constant 0 : index
      %67 = vector.load %arg10[%c1_33, %c0_34, %c0_35] : memref<4x8x1xf32, #tpu.memory_space<vmem>>, vector<1x8x1xf32>
      %68 = vector.shape_cast %67 : vector<1x8x1xf32> to vector<8x1xf32>
      %69 = math.absf %66 : vector<8x8xf32>
      %cst_36 = arith.constant dense<0.000000e+00> : vector<8xf32>
      %70 = vector.multi_reduction <add>, %69, %cst_36 [1] : vector<8x8xf32> to vector<8xf32>
      %71 = vector.shape_cast %70 : vector<8xf32> to vector<8x1xf32>
      %72 = arith.addf %68, %71 : vector<8x1xf32>
      %c1_37 = arith.constant 1 : index
      %c0_38 = arith.constant 0 : index
      %c0_39 = arith.constant 0 : index
      %73 = vector.load %arg10[%c1_37, %c0_38, %c0_39] : memref<4x8x1xf32, #tpu.memory_space<vmem>>, vector<1x8x1xf32>
      %74 = vector.shape_cast %73 : vector<1x8x1xf32> to vector<8x1xf32>
      %75 = vector.shape_cast %72 : vector<8x1xf32> to vector<1x8x1xf32>
      tpu.vector_store %arg10[%c1_37, %c0_38, %c0_39], %75 {strides = array<i32>} : memref<4x8x1xf32, #tpu.memory_space<vmem>>, vector<1x8x1xf32>,
      %c1_40 = arith.constant 1 : index
      %c0_41 = arith.constant 0 : index
      %c0_42 = arith.constant 0 : index
      %76 = vector.load %arg9[%c1_40, %c0_41, %c0_42] : memref<4x8x8xf32, #tpu.memory_space<vmem>>, vector<1x8x8xf32>
      %77 = vector.shape_cast %76 : vector<1x8x8xf32> to vector<8x8xf32>
      %cst_43 = arith.constant dense<0.000000e+00> : vector<8x8xf32>
      %78 = tpu.matmul %66, %64, %cst_43 {dimension_numbers = #tpu.dot_dimension_numbers<[1], [0], [0], [1], [0, 0, 1, 1], [], []>} : vector<8x8xf32>, vector<8x8xf32>, vector<8x8xf32> -> vector<8x8xf32>
      %79 = arith.addf %77, %78 : vector<8x8xf32>
      %c1_44 = arith.constant 1 : index
      %c0_45 = arith.constant 0 : index
      %c0_46 = arith.constant 0 : index
      %80 = vector.load %arg9[%c1_44, %c0_45, %c0_46] : memref<4x8x8xf32, #tpu.memory_space<vmem>>, vector<1x8x8xf32>
      %81 = vector.shape_cast %80 : vector<1x8x8xf32> to vector<8x8xf32>
      %82 = vector.shape_cast %79 : vector<8x8xf32> to vector<1x8x8xf32>
      tpu.vector_store %arg9[%c1_44, %c0_45, %c0_46], %82 {strides = array<i32>} : memref<4x8x8xf32, #tpu.memory_space<vmem>>, vector<1x8x8xf32>,
      %c2 = arith.constant 2 : index
      %83 = memref.load %arg7[%c2] : memref<4xf32, #tpu.memory_space<smem>>
      %84 = vector.broadcast %83 : f32 to vector<8x8xf32>
      %85 = arith.mulf %28, %84 : vector<8x8xf32>
      %86 = math.exp %85 : vector<8x8xf32>
      %cst_47 = arith.constant 0.000000e+00 : f32
      %87 = vector.broadcast %cst_47 : f32 to vector<8x8xf32>
      %88 = arith.select %24, %86, %87 : vector<8x8xi1>, vector<8x8xf32>
      %89 = vector.extract_strided_slice %13 {offsets = [0, 16], sizes = [8, 8], strides = [1, 1]} : vector<8x32xf32> to vector<8x8xf32>
      %90 = vector.extract_strided_slice %15 {offsets = [0, 16], sizes = [8, 8], strides = [1, 1]} : vector<8x32xf32> to vector<8x8xf32>
      %91 = vector.extract_strided_slice %17 {offsets = [0, 16], sizes = [8, 8], strides = [1, 1]} : vector<8x32xf32> to vector<8x8xf32>
      %cst_48 = arith.constant dense<0.000000e+00> : vector<8x8xf32>
      %92 = tpu.matmul %89, %90, %cst_48 {dimension_numbers = #tpu.dot_dimension_numbers<[1], [1], [0], [0], [0, 0, 1, 0], [], []>} : vector<8x8xf32>, vector<8x8xf32>, vector<8x8xf32> -> vector<8x8xf32>
      %93 = arith.mulf %92, %88 : vector<8x8xf32>
      %c2_49 = arith.constant 2 : index
      %c0_50 = arith.constant 0 : index
      %c0_51 = arith.constant 0 : index
      %94 = vector.load %arg10[%c2_49, %c0_50, %c0_51] : memref<4x8x1xf32, #tpu.memory_space<vmem>>, vector<1x8x1xf32>
      %95 = vector.shape_cast %94 : vector<1x8x1xf32> to vector<8x1xf32>
      %96 = math.absf %93 : vector<8x8xf32>
      %cst_52 = arith.constant dense<0.000000e+00> : vector<8xf32>
      %97 = vector.multi_reduction <add>, %96, %cst_52 [1] : vector<8x8xf32> to vector<8xf32>
      %98 = vector.shape_cast %97 : vector<8xf32> to vector<8x1xf32>
      %99 = arith.addf %95, %98 : vector<8x1xf32>
      %c2_53 = arith.constant 2 : index
      %c0_54 = arith.constant 0 : index
      %c0_55 = arith.constant 0 : index
      %100 = vector.load %arg10[%c2_53, %c0_54, %c0_55] : memref<4x8x1xf32, #tpu.memory_space<vmem>>, vector<1x8x1xf32>
      %101 = vector.shape_cast %100 : vector<1x8x1xf32> to vector<8x1xf32>
      %102 = vector.shape_cast %99 : vector<8x1xf32> to vector<1x8x1xf32>
      tpu.vector_store %arg10[%c2_53, %c0_54, %c0_55], %102 {strides = array<i32>} : memref<4x8x1xf32, #tpu.memory_space<vmem>>, vector<1x8x1xf32>,
      %c2_56 = arith.constant 2 : index
      %c0_57 = arith.constant 0 : index
      %c0_58 = arith.constant 0 : index
      %103 = vector.load %arg9[%c2_56, %c0_57, %c0_58] : memref<4x8x8xf32, #tpu.memory_space<vmem>>, vector<1x8x8xf32>
      %104 = vector.shape_cast %103 : vector<1x8x8xf32> to vector<8x8xf32>
      %cst_59 = arith.constant dense<0.000000e+00> : vector<8x8xf32>
      %105 = tpu.matmul %93, %91, %cst_59 {dimension_numbers = #tpu.dot_dimension_numbers<[1], [0], [0], [1], [0, 0, 1, 1], [], []>} : vector<8x8xf32>, vector<8x8xf32>, vector<8x8xf32> -> vector<8x8xf32>
      %106 = arith.addf %104, %105 : vector<8x8xf32>
      %c2_60 = arith.constant 2 : index
      %c0_61 = arith.constant 0 : index
      %c0_62 = arith.constant 0 : index
      %107 = vector.load %arg9[%c2_60, %c0_61, %c0_62] : memref<4x8x8xf32, #tpu.memory_space<vmem>>, vector<1x8x8xf32>
      %108 = vector.shape_cast %107 : vector<1x8x8xf32> to vector<8x8xf32>
      %109 = vector.shape_cast %106 : vector<8x8xf32> to vector<1x8x8xf32>
      tpu.vector_store %arg9[%c2_60, %c0_61, %c0_62], %109 {strides = array<i32>} : memref<4x8x8xf32, #tpu.memory_space<vmem>>, vector<1x8x8xf32>,
      %c3 = arith.constant 3 : index
      %110 = memref.load %arg7[%c3] : memref<4xf32, #tpu.memory_space<smem>>
      %111 = vector.broadcast %110 : f32 to vector<8x8xf32>
      %112 = arith.mulf %28, %111 : vector<8x8xf32>
      %113 = math.exp %112 : vector<8x8xf32>
      %cst_63 = arith.constant 0.000000e+00 : f32
      %114 = vector.broadcast %cst_63 : f32 to vector<8x8xf32>
      %115 = arith.select %24, %113, %114 : vector<8x8xi1>, vector<8x8xf32>
      %116 = vector.extract_strided_slice %13 {offsets = [0, 24], sizes = [8, 8], strides = [1, 1]} : vector<8x32xf32> to vector<8x8xf32>
      %117 = vector.extract_strided_slice %15 {offsets = [0, 24], sizes = [8, 8], strides = [1, 1]} : vector<8x32xf32> to vector<8x8xf32>
      %118 = vector.extract_strided_slice %17 {offsets = [0, 24], sizes = [8, 8], strides = [1, 1]} : vector<8x32xf32> to vector<8x8xf32>
      %cst_64 = arith.constant dense<0.000000e+00> : vector<8x8xf32>
      %119 = tpu.matmul %116, %117, %cst_64 {dimension_numbers = #tpu.dot_dimension_numbers<[1], [1], [0], [0], [0, 0, 1, 0], [], []>} : vector<8x8xf32>, vector<8x8xf32>, vector<8x8xf32> -> vector<8x8xf32>
      %120 = arith.mulf %119, %115 : vector<8x8xf32>
      %c3_65 = arith.constant 3 : index
      %c0_66 = arith.constant 0 : index
      %c0_67 = arith.constant 0 : index
      %121 = vector.load %arg10[%c3_65, %c0_66, %c0_67] : memref<4x8x1xf32, #tpu.memory_space<vmem>>, vector<1x8x1xf32>
      %122 = vector.shape_cast %121 : vector<1x8x1xf32> to vector<8x1xf32>
      %123 = math.absf %120 : vector<8x8xf32>
      %cst_68 = arith.constant dense<0.000000e+00> : vector<8xf32>
      %124 = vector.multi_reduction <add>, %123, %cst_68 [1] : vector<8x8xf32> to vector<8xf32>
      %125 = vector.shape_cast %124 : vector<8xf32> to vector<8x1xf32>
      %126 = arith.addf %122, %125 : vector<8x1xf32>
      %c3_69 = arith.constant 3 : index
      %c0_70 = arith.constant 0 : index
      %c0_71 = arith.constant 0 : index
      %127 = vector.load %arg10[%c3_69, %c0_70, %c0_71] : memref<4x8x1xf32, #tpu.memory_space<vmem>>, vector<1x8x1xf32>
      %128 = vector.shape_cast %127 : vector<1x8x1xf32> to vector<8x1xf32>
      %129 = vector.shape_cast %126 : vector<8x1xf32> to vector<1x8x1xf32>
      tpu.vector_store %arg10[%c3_69, %c0_70, %c0_71], %129 {strides = array<i32>} : memref<4x8x1xf32, #tpu.memory_space<vmem>>, vector<1x8x1xf32>,
      %c3_72 = arith.constant 3 : index
      %c0_73 = arith.constant 0 : index
      %c0_74 = arith.constant 0 : index
      %130 = vector.load %arg9[%c3_72, %c0_73, %c0_74] : memref<4x8x8xf32, #tpu.memory_space<vmem>>, vector<1x8x8xf32>
      %131 = vector.shape_cast %130 : vector<1x8x8xf32> to vector<8x8xf32>
      %cst_75 = arith.constant dense<0.000000e+00> : vector<8x8xf32>
      %132 = tpu.matmul %120, %118, %cst_75 {dimension_numbers = #tpu.dot_dimension_numbers<[1], [0], [0], [1], [0, 0, 1, 1], [], []>} : vector<8x8xf32>, vector<8x8xf32>, vector<8x8xf32> -> vector<8x8xf32>
      %133 = arith.addf %131, %132 : vector<8x8xf32>
      %c3_76 = arith.constant 3 : index
      %c0_77 = arith.constant 0 : index
      %c0_78 = arith.constant 0 : index
      %134 = vector.load %arg9[%c3_76, %c0_77, %c0_78] : memref<4x8x8xf32, #tpu.memory_space<vmem>>, vector<1x8x8xf32>
      %135 = vector.shape_cast %134 : vector<1x8x8xf32> to vector<8x8xf32>
      %136 = vector.shape_cast %133 : vector<8x8xf32> to vector<1x8x8xf32>
      tpu.vector_store %arg9[%c3_76, %c0_77, %c0_78], %136 {strides = array<i32>} : memref<4x8x8xf32, #tpu.memory_space<vmem>>, vector<1x8x8xf32>,
    } else {
    }
    %c0_i32_4 = arith.constant 0 : i32
    %9 = arith.cmpi eq, %arg2, %c0_i32_4 : i32
    %10 = arith.extui %9 : i1 to i32
    %c0_i32_5 = arith.constant 0 : i32
    %11 = arith.cmpi ne, %10, %c0_i32_5 : i32
    scf.if %11 {
      %c0 = arith.constant 0 : index
      %c0_6 = arith.constant 0 : index
      %c0_7 = arith.constant 0 : index
      %12 = vector.load %arg6[%c0, %c0_6, %c0_7] : memref<1x8x32xf32, #tpu.memory_space<vmem>>, vector<1x8x32xf32>
      %13 = vector.shape_cast %12 : vector<1x8x32xf32> to vector<8x32xf32>
      %c0_8 = arith.constant 0 : index
      %c0_9 = arith.constant 0 : index
      %c0_10 = arith.constant 0 : index
      %14 = vector.load %arg10[%c0_8, %c0_9, %c0_10] : memref<4x8x1xf32, #tpu.memory_space<vmem>>, vector<1x8x1xf32>
      %15 = vector.shape_cast %14 : vector<1x8x1xf32> to vector<8x1xf32>
      %cst = arith.constant 1.000000e+00 : f32
      %cst_11 = arith.constant 5.000000e+04 : f32
      %16 = vector.broadcast %cst : f32 to vector<8x1xf32>
      %17 = arith.maximumf %16, %15 : vector<8x1xf32>
      %18 = vector.broadcast %cst_11 : f32 to vector<8x1xf32>
      %19 = arith.minimumf %18, %17 : vector<8x1xf32>
      %c0_12 = arith.constant 0 : index
      %c0_13 = arith.constant 0 : index
      %c0_14 = arith.constant 0 : index
      %20 = vector.load %arg9[%c0_12, %c0_13, %c0_14] : memref<4x8x8xf32, #tpu.memory_space<vmem>>, vector<1x8x8xf32>
      %21 = vector.shape_cast %20 : vector<1x8x8xf32> to vector<8x8xf32>
      %22 = vector.broadcast %19 : vector<8x1xf32> to vector<8x8xf32>
      %23 = arith.divf %21, %22 : vector<8x8xf32>
      %24 = arith.mulf %23, %23 : vector<8x8xf32>
      %cst_15 = arith.constant dense<0.000000e+00> : vector<8xf32>
      %25 = vector.multi_reduction <add>, %24, %cst_15 [1] : vector<8x8xf32> to vector<8xf32>
      %26 = vector.shape_cast %25 : vector<8xf32> to vector<8x1xf32>
      %cst_16 = arith.constant 8.000000e+00 : f32
      %27 = vector.broadcast %cst_16 : f32 to vector<8x1xf32>
      %28 = arith.divf %26, %27 : vector<8x1xf32>
      %cst_17 = arith.constant 9.99999997E-7 : f32
      %29 = vector.broadcast %cst_17 : f32 to vector<8x1xf32>
      %30 = arith.addf %28, %29 : vector<8x1xf32>
      %31 = math.rsqrt %30 : vector<8x1xf32>
      %32 = vector.broadcast %31 : vector<8x1xf32> to vector<8x8xf32>
      %33 = arith.mulf %23, %32 : vector<8x8xf32>
      %34 = vector.extract_strided_slice %13 {offsets = [0, 0], sizes = [8, 8], strides = [1, 1]} : vector<8x32xf32> to vector<8x8xf32>
      %35 = arith.negf %34 : vector<8x8xf32>
      %36 = math.exp %35 : vector<8x8xf32>
      %cst_18 = arith.constant 1.000000e+00 : f32
      %37 = vector.broadcast %cst_18 : f32 to vector<8x8xf32>
      %38 = arith.addf %37, %36 : vector<8x8xf32>
      %39 = arith.divf %37, %38 : vector<8x8xf32>
      %40 = arith.mulf %34, %39 : vector<8x8xf32>
      %41 = arith.mulf %40, %33 : vector<8x8xf32>
      %c1 = arith.constant 1 : index
      %c0_19 = arith.constant 0 : index
      %c0_20 = arith.constant 0 : index
      %42 = vector.load %arg10[%c1, %c0_19, %c0_20] : memref<4x8x1xf32, #tpu.memory_space<vmem>>, vector<1x8x1xf32>
      %43 = vector.shape_cast %42 : vector<1x8x1xf32> to vector<8x1xf32>
      %cst_21 = arith.constant 1.000000e+00 : f32
      %cst_22 = arith.constant 5.000000e+04 : f32
      %44 = vector.broadcast %cst_21 : f32 to vector<8x1xf32>
      %45 = arith.maximumf %44, %43 : vector<8x1xf32>
      %46 = vector.broadcast %cst_22 : f32 to vector<8x1xf32>
      %47 = arith.minimumf %46, %45 : vector<8x1xf32>
      %c1_23 = arith.constant 1 : index
      %c0_24 = arith.constant 0 : index
      %c0_25 = arith.constant 0 : index
      %48 = vector.load %arg9[%c1_23, %c0_24, %c0_25] : memref<4x8x8xf32, #tpu.memory_space<vmem>>, vector<1x8x8xf32>
      %49 = vector.shape_cast %48 : vector<1x8x8xf32> to vector<8x8xf32>
      %50 = vector.broadcast %47 : vector<8x1xf32> to vector<8x8xf32>
      %51 = arith.divf %49, %50 : vector<8x8xf32>
      %52 = arith.mulf %51, %51 : vector<8x8xf32>
      %cst_26 = arith.constant dense<0.000000e+00> : vector<8xf32>
      %53 = vector.multi_reduction <add>, %52, %cst_26 [1] : vector<8x8xf32> to vector<8xf32>
      %54 = vector.shape_cast %53 : vector<8xf32> to vector<8x1xf32>
      %cst_27 = arith.constant 8.000000e+00 : f32
      %55 = vector.broadcast %cst_27 : f32 to vector<8x1xf32>
      %56 = arith.divf %54, %55 : vector<8x1xf32>
      %cst_28 = arith.constant 9.99999997E-7 : f32
      %57 = vector.broadcast %cst_28 : f32 to vector<8x1xf32>
      %58 = arith.addf %56, %57 : vector<8x1xf32>
      %59 = math.rsqrt %58 : vector<8x1xf32>
      %60 = vector.broadcast %59 : vector<8x1xf32> to vector<8x8xf32>
      %61 = arith.mulf %51, %60 : vector<8x8xf32>
      %62 = vector.extract_strided_slice %13 {offsets = [0, 8], sizes = [8, 8], strides = [1, 1]} : vector<8x32xf32> to vector<8x8xf32>
      %63 = arith.negf %62 : vector<8x8xf32>
      %64 = math.exp %63 : vector<8x8xf32>
      %cst_29 = arith.constant 1.000000e+00 : f32
      %65 = vector.broadcast %cst_29 : f32 to vector<8x8xf32>
      %66 = arith.addf %65, %64 : vector<8x8xf32>
      %67 = arith.divf %65, %66 : vector<8x8xf32>
      %68 = arith.mulf %62, %67 : vector<8x8xf32>
      %69 = arith.mulf %68, %61 : vector<8x8xf32>
      %c2 = arith.constant 2 : index
      %c0_30 = arith.constant 0 : index
      %c0_31 = arith.constant 0 : index
      %70 = vector.load %arg10[%c2, %c0_30, %c0_31] : memref<4x8x1xf32, #tpu.memory_space<vmem>>, vector<1x8x1xf32>
      %71 = vector.shape_cast %70 : vector<1x8x1xf32> to vector<8x1xf32>
      %cst_32 = arith.constant 1.000000e+00 : f32
      %cst_33 = arith.constant 5.000000e+04 : f32
      %72 = vector.broadcast %cst_32 : f32 to vector<8x1xf32>
      %73 = arith.maximumf %72, %71 : vector<8x1xf32>
      %74 = vector.broadcast %cst_33 : f32 to vector<8x1xf32>
      %75 = arith.minimumf %74, %73 : vector<8x1xf32>
      %c2_34 = arith.constant 2 : index
      %c0_35 = arith.constant 0 : index
      %c0_36 = arith.constant 0 : index
      %76 = vector.load %arg9[%c2_34, %c0_35, %c0_36] : memref<4x8x8xf32, #tpu.memory_space<vmem>>, vector<1x8x8xf32>
      %77 = vector.shape_cast %76 : vector<1x8x8xf32> to vector<8x8xf32>
      %78 = vector.broadcast %75 : vector<8x1xf32> to vector<8x8xf32>
      %79 = arith.divf %77, %78 : vector<8x8xf32>
      %80 = arith.mulf %79, %79 : vector<8x8xf32>
      %cst_37 = arith.constant dense<0.000000e+00> : vector<8xf32>
      %81 = vector.multi_reduction <add>, %80, %cst_37 [1] : vector<8x8xf32> to vector<8xf32>
      %82 = vector.shape_cast %81 : vector<8xf32> to vector<8x1xf32>
      %cst_38 = arith.constant 8.000000e+00 : f32
      %83 = vector.broadcast %cst_38 : f32 to vector<8x1xf32>
      %84 = arith.divf %82, %83 : vector<8x1xf32>
      %cst_39 = arith.constant 9.99999997E-7 : f32
      %85 = vector.broadcast %cst_39 : f32 to vector<8x1xf32>
      %86 = arith.addf %84, %85 : vector<8x1xf32>
      %87 = math.rsqrt %86 : vector<8x1xf32>
      %88 = vector.broadcast %87 : vector<8x1xf32> to vector<8x8xf32>
      %89 = arith.mulf %79, %88 : vector<8x8xf32>
      %90 = vector.extract_strided_slice %13 {offsets = [0, 16], sizes = [8, 8], strides = [1, 1]} : vector<8x32xf32> to vector<8x8xf32>
      %91 = arith.negf %90 : vector<8x8xf32>
      %92 = math.exp %91 : vector<8x8xf32>
      %cst_40 = arith.constant 1.000000e+00 : f32
      %93 = vector.broadcast %cst_40 : f32 to vector<8x8xf32>
      %94 = arith.addf %93, %92 : vector<8x8xf32>
      %95 = arith.divf %93, %94 : vector<8x8xf32>
      %96 = arith.mulf %90, %95 : vector<8x8xf32>
      %97 = arith.mulf %96, %89 : vector<8x8xf32>
      %c3 = arith.constant 3 : index
      %c0_41 = arith.constant 0 : index
      %c0_42 = arith.constant 0 : index
      %98 = vector.load %arg10[%c3, %c0_41, %c0_42] : memref<4x8x1xf32, #tpu.memory_space<vmem>>, vector<1x8x1xf32>
      %99 = vector.shape_cast %98 : vector<1x8x1xf32> to vector<8x1xf32>
      %cst_43 = arith.constant 1.000000e+00 : f32
      %cst_44 = arith.constant 5.000000e+04 : f32
      %100 = vector.broadcast %cst_43 : f32 to vector<8x1xf32>
      %101 = arith.maximumf %100, %99 : vector<8x1xf32>
      %102 = vector.broadcast %cst_44 : f32 to vector<8x1xf32>
      %103 = arith.minimumf %102, %101 : vector<8x1xf32>
      %c3_45 = arith.constant 3 : index
      %c0_46 = arith.constant 0 : index
      %c0_47 = arith.constant 0 : index
      %104 = vector.load %arg9[%c3_45, %c0_46, %c0_47] : memref<4x8x8xf32, #tpu.memory_space<vmem>>, vector<1x8x8xf32>
      %105 = vector.shape_cast %104 : vector<1x8x8xf32> to vector<8x8xf32>
      %106 = vector.broadcast %103 : vector<8x1xf32> to vector<8x8xf32>
      %107 = arith.divf %105, %106 : vector<8x8xf32>
      %108 = arith.mulf %107, %107 : vector<8x8xf32>
      %cst_48 = arith.constant dense<0.000000e+00> : vector<8xf32>
      %109 = vector.multi_reduction <add>, %108, %cst_48 [1] : vector<8x8xf32> to vector<8xf32>
      %110 = vector.shape_cast %109 : vector<8xf32> to vector<8x1xf32>
      %cst_49 = arith.constant 8.000000e+00 : f32
      %111 = vector.broadcast %cst_49 : f32 to vector<8x1xf32>
      %112 = arith.divf %110, %111 : vector<8x1xf32>
      %cst_50 = arith.constant 9.99999997E-7 : f32
      %113 = vector.broadcast %cst_50 : f32 to vector<8x1xf32>
      %114 = arith.addf %112, %113 : vector<8x1xf32>
      %115 = math.rsqrt %114 : vector<8x1xf32>
      %116 = vector.broadcast %115 : vector<8x1xf32> to vector<8x8xf32>
      %117 = arith.mulf %107, %116 : vector<8x8xf32>
      %118 = vector.extract_strided_slice %13 {offsets = [0, 24], sizes = [8, 8], strides = [1, 1]} : vector<8x32xf32> to vector<8x8xf32>
      %119 = arith.negf %118 : vector<8x8xf32>
      %120 = math.exp %119 : vector<8x8xf32>
      %cst_51 = arith.constant 1.000000e+00 : f32
      %121 = vector.broadcast %cst_51 : f32 to vector<8x8xf32>
      %122 = arith.addf %121, %120 : vector<8x8xf32>
      %123 = arith.divf %121, %122 : vector<8x8xf32>
      %124 = arith.mulf %118, %123 : vector<8x8xf32>
      %125 = arith.mulf %124, %117 : vector<8x8xf32>
      %126 = tpu.concatenate %41, %69, %97, %125 in 1 : vector<8x8xf32>, vector<8x8xf32>, vector<8x8xf32>, vector<8x8xf32> -> vector<8x32xf32>
      %c0_52 = arith.constant 0 : index
      %c0_53 = arith.constant 0 : index
      %c0_54 = arith.constant 0 : index
      %127 = vector.load %arg8[%c0_52, %c0_53, %c0_54] : memref<1x8x32xf32, #tpu.memory_space<vmem>>, vector<1x8x32xf32>
      %128 = vector.shape_cast %127 : vector<1x8x32xf32> to vector<8x32xf32>
      %129 = vector.shape_cast %126 : vector<8x32xf32> to vector<1x8x32xf32>
      tpu.vector_store %arg8[%c0_52, %c0_53, %c0_54], %129 {strides = array<i32>} : memref<1x8x32xf32, #tpu.memory_space<vmem>>, vector<1x8x32xf32>,
    } else {
    }
    return
  }
  func.func @transform_0(%arg0: i32, %arg1: i32, %arg2: i32) -> (i32, i32, i32) {
    %c0_i32 = arith.constant 0 : i32
    %c0_i32_0 = arith.constant 0 : i32
    return %arg0, %arg1, %c0_i32 : i32, i32, i32
  }
  func.func @transform_1(%arg0: i32, %arg1: i32, %arg2: i32) -> (i32, i32, i32) {
    %c0_i32 = arith.constant 0 : i32
    %c0_i32_0 = arith.constant 0 : i32
    return %arg0, %arg2, %c0_i32 : i32, i32, i32
  }
  func.func @transform_2(%arg0: i32, %arg1: i32, %arg2: i32) -> (i32, i32, i32) {
    %c0_i32 = arith.constant 0 : i32
    %c0_i32_0 = arith.constant 0 : i32
    return %arg0, %arg2, %c0_i32 : i32, i32, i32
  }
  func.func @transform_3(%arg0: i32, %arg1: i32, %arg2: i32) -> (i32, i32, i32) {
    %c0_i32 = arith.constant 0 : i32
    %c0_i32_0 = arith.constant 0 : i32
    return %arg0, %arg1, %c0_i32 : i32, i32, i32
  }
  func.func @transform_4(%arg0: i32, %arg1: i32, %arg2: i32) -> i32 {
    %c0_i32 = arith.constant 0 : i32
    %c0_i32_0 = arith.constant 0 : i32
    return %c0_i32 : i32
  }
  func.func @transform_5(%arg0: i32, %arg1: i32, %arg2: i32) -> (i32, i32, i32) {
    %c0_i32 = arith.constant 0 : i32
    %c0_i32_0 = arith.constant 0 : i32
    return %arg0, %arg1, %c0_i32 : i32, i32, i32
  }
}

</mosaic_0001>

<llo_original>
// kernel: multiscale_retention_forward.3
$region0: #{multiscale_retention_forward.3}
  #allocation0 [shape = 'u32[]', space=smem, size = 0x4, offset = 0x4, fixed_abs, tag = 'smem constant byte address 0x4 - core index']
  #allocation1 [shape = 'u32[144,128]{1,0:T(1,128)}', space=vmem, size = 0x12000, scoped, tag = 'internal scratch']
  #allocation2 [shape = 'f32[16,128]{1,0:T(8,128)}', space=vmem, size = 0x2000, scoped, tag = 'scratch operand']
  %s0 = inlined_call_operand.hbm [shape: f32[16,32], index: 0, kind: input, shape index: {}]
  %s1 = inlined_call_operand.hbm [shape: f32[32,128], index: 1, kind: input, shape index: {}]
  %s2 = inlined_call_operand.vmem [shape: f32[16,128], index: 2, kind: output, shape index: {}]
  %s3 = sld [smem:[#allocation0]]
  $region34: #{multiscale_retention_forward.3} parent=0
    _
  %s5 = ssub.s32 1, %s3
  %s6 = scalar_select 0, %s5, %s3
  $region1: #{multiscale_retention_forward.3} parent=0
    #allocation3 [shape = 'u8[8192]{0}', space=vmem, size = 0x2000, scoped, tag = 'input window, operand 0, single buffered']
    #allocation4 [shape = 's32[1]{0}', space=sflag, size = 0x4, scoped, tag = 'scoped memory for multiscale_retention_forward.3']
    #allocation5 [shape = 'u8[16384]{0}', space=vmem, size = 0x4000, scoped, tag = 'input window, operand 1, single buffered']
    #allocation6 [shape = 's32[1]{0}', space=sflag, size = 0x4, scoped, tag = 'scoped memory for multiscale_retention_forward.3']
    %7 = vsyncpa [#allocation4], 0
    %8 = vsyncpa [#allocation6], 0
    // Predicated region
    $region2: #{multiscale_retention_forward.3} parent=1 // pred_check
      _
    $region3: #{multiscale_retention_forward.3} parent=1 // pred_check_branch
      %10 = sbr.rel (0) target = $region5
    $region4: #{multiscale_retention_forward.3} parent=1 // pred_region
      %s12 = ssub.s32 256, 256
      %13 = vsyncadd [#allocation4], %s12
      %s14 = sshll.u32 [#allocation3], 4
      %s15 = int_to_ptr.vmem [resolvable:$true] %s14
      %20 = dma.hbm_to_vmem [thread:$0]  %s0, 256, %s15, [#allocation4], 128, 128, 8
    $region5: #{multiscale_retention_forward.3} parent=1 // pred_fallthru
      _
    // Predicated region
    $region6: #{multiscale_retention_forward.3} parent=1 // pred_check
      _
    $region7: #{multiscale_retention_forward.3} parent=1 // pred_check_branch
      %22 = sbr.rel (0) target = $region9
    $region8: #{multiscale_retention_forward.3} parent=1 // pred_region
      %s24 = ssub.s32 512, 512
      %25 = vsyncadd [#allocation6], %s24
      %s26 = sshll.u32 [#allocation5], 4
      %s27 = int_to_ptr.vmem [resolvable:$true] %s26
      %32 = dma.hbm_to_vmem [thread:$0]  %s1, 512, %s27, [#allocation6], 128, 128, 8
    $region9: #{multiscale_retention_forward.3} parent=1 // pred_fallthru
      _
    // Predicated region
    $region10: #{multiscale_retention_forward.3} parent=1 // pred_check
      _
    $region11: #{multiscale_retention_forward.3} parent=1 // pred_check_branch
      %34 = sbr.rel (0) target = $region13
    $region12: #{multiscale_retention_forward.3} parent=1 // pred_region
      %35 = dma.done [#allocation4], 256
    $region13: #{multiscale_retention_forward.3} parent=1 // pred_fallthru
      _
    // Predicated region
    $region14: #{multiscale_retention_forward.3} parent=1 // pred_check
      _
    $region15: #{multiscale_retention_forward.3} parent=1 // pred_check_branch
      %37 = sbr.rel (0) target = $region17
    $region16: #{multiscale_retention_forward.3} parent=1 // pred_region
      %38 = dma.done [#allocation6], 512
    $region17: #{multiscale_retention_forward.3} parent=1 // pred_fallthru
      _
    %p39 = scmp.eq.s32.totalorder 0, 0
    // Predicated region
    $region18: #{multiscale_retention_forward.3} parent=1 // pred_check
      %p40 = pneg %p39
    $region19: #{multiscale_retention_forward.3} parent=1 // pred_check_branch
      %42 = sbr.rel (%p40) target = $region21
    $region20: #{multiscale_retention_forward.3} parent=1 // pred_region
      %43 = vst [vmem:[#allocation2] sm:$0xff] 0.0
      %44 = vst [vmem:[#allocation2 + $0x8] sm:$0xff] 0.0
    $region21: #{multiscale_retention_forward.3} parent=1 // pred_fallthru
      _
    %v45 = vld [vmem:[#allocation2] sm:$0xff]
    %v46 = vld [vmem:[#allocation2 + $0x8] sm:$0xff]
    %v47 = vld [vmem:[#allocation3] sm:$0xff]
    %v48 = vld [vmem:[#allocation3 + $0x8] sm:$0xff]
    %v49 = vld [vmem:[#allocation5] sm:$0xff]
    %v50 = vld [vmem:[#allocation5 + $0x8] sm:$0xff]
    %v51 = vld [vmem:[#allocation5 + $0x10] sm:$0xff]
    %v52 = vld [vmem:[#allocation5 + $0x18] sm:$0xff]
    %vm53 = vcmask 261120
    %v55 = vsel %vm53, %v47, 0
    %v58 = vsel %vm53, %v48, 0
    %60 = vmatprep.subr.mxu0 0.0
    %61 = vmatpush1.msra.mxu0 0.0
    %62 = vmatprep.subr.mxu0 0.0
    %63 = vmatpush1.msra.mxu0 0.0
    %64 = vmatprep.subr.mxu0 0.0
    %65 = vmatpush1.msra.mxu0 0.0
    %66 = vmatprep.subr.mxu0 0.0
    %67 = vmatpush1.msra.mxu0 0.0
    %68 = vmatprep.subr.mxu0 0.0
    %69 = vmatpush1.msra.mxu0 0.0
    %70 = vmatprep.subr.mxu0 0.0
    %71 = vmatpush1.msra.mxu0 0.0
    %72 = vmatprep.subr.mxu0 0.0
    %73 = vmatpush1.msra.mxu0 0.0
    %74 = vmatprep.subr.mxu0 0.0
    %75 = vmatpush1.msra.mxu0 0.0
    %76 = vmatprep.subr.mxu0 0.0
    %77 = vmatpush1.msra.mxu0 0.0
    %78 = vmatprep.subr.mxu0 0.0
    %79 = vmatpush1.msra.mxu0 0.0
    %80 = vmatprep.subr.mxu0 0.0
    %81 = vmatpush1.msra.mxu0 0.0
    %82 = vmatprep.subr.mxu0 0.0
    %83 = vmatpush1.msra.mxu0 0.0
    %84 = vmatprep.subr.mxu0 0.0
    %85 = vmatpush1.msra.mxu0 %v52
    %86 = vmatprep.subr.mxu0 0.0
    %87 = vmatpush1.msra.mxu0 %v51
    %88 = vmatprep.subr.mxu0 0.0
    %89 = vmatpush1.msra.mxu0 %v50
    %90 = vmatprep.subr.mxu0 0.0
    %91 = vmatpush1.msra.mxu0 %v49
    %92 = vmatprep.subr.mxu0 0.0
    %93 = vmatpush2.msra.mxu0 0.0
    %94 = vmatprep.subr.mxu0 0.0
    %95 = vmatpush2.msra.mxu0 0.0
    %96 = vmatprep.subr.mxu0 0.0
    %97 = vmatpush2.msra.mxu0 0.0
    %98 = vmatprep.subr.mxu0 0.0
    %99 = vmatpush2.msra.mxu0 0.0
    %100 = vmatprep.subr.mxu0 0.0
    %101 = vmatpush2.msra.mxu0 0.0
    %102 = vmatprep.subr.mxu0 0.0
    %103 = vmatpush2.msra.mxu0 0.0
    %104 = vmatprep.subr.mxu0 0.0
    %105 = vmatpush2.msra.mxu0 0.0
    %106 = vmatprep.subr.mxu0 0.0
    %107 = vmatpush2.msra.mxu0 0.0
    %108 = vmatprep.subr.mxu0 0.0
    %109 = vmatpush2.msra.mxu0 0.0
    %110 = vmatprep.subr.mxu0 0.0
    %111 = vmatpush2.msra.mxu0 0.0
    %112 = vmatprep.subr.mxu0 0.0
    %113 = vmatpush2.msra.mxu0 0.0
    %114 = vmatprep.subr.mxu0 0.0
    %115 = vmatpush2.msra.mxu0 0.0
    %116 = vmatprep.subr.mxu0 0.0
    %117 = vmatpush2.msra.mxu0 0.0
    %118 = vmatprep.subr.mxu0 0.0
    %119 = vmatpush2.msra.mxu0 0.0
    %120 = vmatprep.subr.mxu0 0.0
    %121 = vmatpush2.msra.mxu0 0.0
    %122 = vmatprep.subr.mxu0 0.0
    %123 = vmatpush2.msra.mxu0 0.0
    %124 = vmatprep.mubr.f32.mxu0 0.0
    %125 = vmatmul.mubr.f32.gmra.mxu0 %v55
    %v126 = vpop.f32.mrf.mxu0
    %v127 = vadd.f32 0.0, %v126
    %v128 = vpop.f32.mrf.mxu0
    %129 = vmatprep.mubr.f32.mxu0 0.0
    %130 = vmatmul.mubr.f32.gmra.mxu0 %v58
    %v131 = vpop.f32.mrf.mxu0
    %v132 = vadd.f32 0.0, %v131
    %v133 = vpop.f32.mrf.mxu0
    %134 = vdwg.mxu0
    %v135 = vadd.f32 %v45, %v127
    %v136 = vadd.f32 %v46, %v132
    %137 = vst [vmem:[#allocation2] sm:$0xff] %v135
    %138 = vst [vmem:[#allocation2 + $0x8] sm:$0xff] %v136
    // Predicated region
    $region22: #{multiscale_retention_forward.3} parent=1 // pred_check
      %p139 = pneg %p39
    $region23: #{multiscale_retention_forward.3} parent=1 // pred_check_branch
      %141 = sbr.rel (%p139) target = $region25
    $region24: #{multiscale_retention_forward.3} parent=1 // pred_region
      %v142 = vld [vmem:[#allocation2] sm:$0xff]
      %v143 = vld [vmem:[#allocation2 + $0x8] sm:$0xff]
      %144 = vst [vmem:[%s2] sm:$0xff] %v142
      %145 = vst [vmem:[%s2 + $0x8] sm:$0xff] %v143
    $region25: #{multiscale_retention_forward.3} parent=1 // pred_fallthru
      _
    // Predicated region
    $region26: #{multiscale_retention_forward.3} parent=1 // pred_check
      _
    $region27: #{multiscale_retention_forward.3} parent=1 // pred_check_branch
      %147 = sbr.rel (0) target = $region29
    $region28: #{multiscale_retention_forward.3} parent=1 // pred_region
      _
    $region29: #{multiscale_retention_forward.3} parent=1 // pred_fallthru
      _
    // Predicated region
    $region30: #{multiscale_retention_forward.3} parent=1 // pred_check
      _
    $region31: #{multiscale_retention_forward.3} parent=1 // pred_check_branch
      %149 = sbr.rel (0) target = $region33
    $region32: #{multiscale_retention_forward.3} parent=1 // pred_region
      _
    $region33: #{multiscale_retention_forward.3} parent=1 // pred_fallthru
      _
    %150 = vsyncpa [#allocation4], 1
    %151 = vsyncpa [#allocation6], 1

// kernel: multiscale_retention_forward.5
$region0: #{multiscale_retention_forward.5}
  #allocation0 [shape = 'u32[]', space=smem, size = 0x4, offset = 0x4, fixed_abs, tag = 'smem constant byte address 0x4 - core index']
  #allocation1 [shape = 'u32[144,128]{1,0:T(1,128)}', space=vmem, size = 0x12000, scoped, tag = 'internal scratch']
  #allocation2 [shape = 'f32[16,32]{1,0:T(8,128)}', space=vmem, size = 0x2000, scoped, tag = 'scratch operand']
  %s0 = inlined_call_operand.vmem [shape: f32[16,32], index: 0, kind: input, shape index: {}]
  %s1 = inlined_call_operand.vmem [shape: f32[32,32], index: 1, kind: input, shape index: {}]
  %s2 = inlined_call_operand.hbm [shape: f32[16,32], index: 2, kind: output, shape index: {}]
  %s3 = sld [smem:[#allocation0]]
  $region26: #{multiscale_retention_forward.5} parent=0
    _
  %s5 = ssub.s32 1, %s3
  %s6 = scalar_select 0, %s5, %s3
  $region1: #{multiscale_retention_forward.5} parent=0
    #allocation3 [shape = 'u8[8192]{0}', space=vmem, size = 0x2000, scoped, tag = 'output window, operand 0, single buffered']
    #allocation4 [shape = 's32[1]{0}', space=sflag, size = 0x4, scoped, tag = 'scoped memory for multiscale_retention_forward.5']
    %7 = vsyncpa [#allocation4], 0
    // Predicated region
    $region2: #{multiscale_retention_forward.5} parent=1 // pred_check
      _
    $region3: #{multiscale_retention_forward.5} parent=1 // pred_check_branch
      %9 = sbr.rel (0) target = $region5
    $region4: #{multiscale_retention_forward.5} parent=1 // pred_region
      _
    $region5: #{multiscale_retention_forward.5} parent=1 // pred_fallthru
      _
    // Predicated region
    $region6: #{multiscale_retention_forward.5} parent=1 // pred_check
      _
    $region7: #{multiscale_retention_forward.5} parent=1 // pred_check_branch
      %11 = sbr.rel (0) target = $region9
    $region8: #{multiscale_retention_forward.5} parent=1 // pred_region
      _
    $region9: #{multiscale_retention_forward.5} parent=1 // pred_fallthru
      _
    %p12 = scmp.eq.s32.totalorder 0, 0
    // Predicated region
    $region10: #{multiscale_retention_forward.5} parent=1 // pred_check
      %p13 = pneg %p12
    $region11: #{multiscale_retention_forward.5} parent=1 // pred_check_branch
      %15 = sbr.rel (%p13) target = $region13
    $region12: #{multiscale_retention_forward.5} parent=1 // pred_region
      %vm16 = vcmask 261120
      %17 = vst.msk [vmem:[#allocation2] sm:$0xff] %vm16, 0.0
      %18 = vst.msk [vmem:[#allocation2 + $0x8] sm:$0xff] %vm16, 0.0
    $region13: #{multiscale_retention_forward.5} parent=1 // pred_fallthru
      _
    %v19 = vld [vmem:[#allocation2] sm:$0xff]
    %v20 = vld [vmem:[#allocation2 + $0x8] sm:$0xff]
    %v21 = vld [vmem:[%s0] sm:$0xff]
    %v22 = vld [vmem:[%s0 + $0x8] sm:$0xff]
    %v23 = vld [vmem:[%s1] sm:$0xff]
    %v24 = vld [vmem:[%s1 + $0x8] sm:$0xff]
    %v25 = vld [vmem:[%s1 + $0x10] sm:$0xff]
    %v26 = vld [vmem:[%s1 + $0x18] sm:$0xff]
    %vm27 = vcmask 261120
    %v29 = vsel %vm27, %v21, 0
    %v32 = vsel %vm27, %v22, 0
    %34 = vmatprep.subr.mxu0 0.0
    %35 = vmatpush1.msra.mxu0 0.0
    %36 = vmatprep.subr.mxu0 0.0
    %37 = vmatpush1.msra.mxu0 0.0
    %38 = vmatprep.subr.mxu0 0.0
    %39 = vmatpush1.msra.mxu0 0.0
    %40 = vmatprep.subr.mxu0 0.0
    %41 = vmatpush1.msra.mxu0 0.0
    %42 = vmatprep.subr.mxu0 0.0
    %43 = vmatpush1.msra.mxu0 0.0
    %44 = vmatprep.subr.mxu0 0.0
    %45 = vmatpush1.msra.mxu0 0.0
    %46 = vmatprep.subr.mxu0 0.0
    %47 = vmatpush1.msra.mxu0 0.0
    %48 = vmatprep.subr.mxu0 0.0
    %49 = vmatpush1.msra.mxu0 0.0
    %50 = vmatprep.subr.mxu0 0.0
    %51 = vmatpush1.msra.mxu0 0.0
    %52 = vmatprep.subr.mxu0 0.0
    %53 = vmatpush1.msra.mxu0 0.0
    %54 = vmatprep.subr.mxu0 0.0
    %55 = vmatpush1.msra.mxu0 0.0
    %56 = vmatprep.subr.mxu0 0.0
    %57 = vmatpush1.msra.mxu0 0.0
    %58 = vmatprep.subr.mxu0 0.0
    %59 = vmatpush1.msra.mxu0 %v26
    %60 = vmatprep.subr.mxu0 0.0
    %61 = vmatpush1.msra.mxu0 %v25
    %62 = vmatprep.subr.mxu0 0.0
    %63 = vmatpush1.msra.mxu0 %v24
    %64 = vmatprep.subr.mxu0 0.0
    %65 = vmatpush1.msra.mxu0 %v23
    %66 = vmatprep.subr.mxu0 0.0
    %67 = vmatpush2.msra.mxu0 0.0
    %68 = vmatprep.subr.mxu0 0.0
    %69 = vmatpush2.msra.mxu0 0.0
    %70 = vmatprep.subr.mxu0 0.0
    %71 = vmatpush2.msra.mxu0 0.0
    %72 = vmatprep.subr.mxu0 0.0
    %73 = vmatpush2.msra.mxu0 0.0
    %74 = vmatprep.subr.mxu0 0.0
    %75 = vmatpush2.msra.mxu0 0.0
    %76 = vmatprep.subr.mxu0 0.0
    %77 = vmatpush2.msra.mxu0 0.0
    %78 = vmatprep.subr.mxu0 0.0
    %79 = vmatpush2.msra.mxu0 0.0
    %80 = vmatprep.subr.mxu0 0.0
    %81 = vmatpush2.msra.mxu0 0.0
    %82 = vmatprep.subr.mxu0 0.0
    %83 = vmatpush2.msra.mxu0 0.0
    %84 = vmatprep.subr.mxu0 0.0
    %85 = vmatpush2.msra.mxu0 0.0
    %86 = vmatprep.subr.mxu0 0.0
    %87 = vmatpush2.msra.mxu0 0.0
    %88 = vmatprep.subr.mxu0 0.0
    %89 = vmatpush2.msra.mxu0 0.0
    %90 = vmatprep.subr.mxu0 0.0
    %91 = vmatpush2.msra.mxu0 0.0
    %92 = vmatprep.subr.mxu0 0.0
    %93 = vmatpush2.msra.mxu0 0.0
    %94 = vmatprep.subr.mxu0 0.0
    %95 = vmatpush2.msra.mxu0 0.0
    %96 = vmatprep.subr.mxu0 0.0
    %97 = vmatpush2.msra.mxu0 0.0
    %98 = vmatprep.mubr.f32.mxu0 0.0
    %99 = vmatmul.mubr.f32.gmra.mxu0 %v29
    %v100 = vpop.f32.mrf.mxu0
    %v101 = vadd.f32 0.0, %v100
    %v102 = vpop.f32.mrf.mxu0
    %103 = vmatprep.mubr.f32.mxu0 0.0
    %104 = vmatmul.mubr.f32.gmra.mxu0 %v32
    %v105 = vpop.f32.mrf.mxu0
    %v106 = vadd.f32 0.0, %v105
    %v107 = vpop.f32.mrf.mxu0
    %108 = vdwg.mxu0
    %v109 = vadd.f32 %v19, %v101
    %v110 = vadd.f32 %v20, %v106
    %111 = vst.msk [vmem:[#allocation2] sm:$0xff] %vm27, %v109
    %112 = vst.msk [vmem:[#allocation2 + $0x8] sm:$0xff] %vm27, %v110
    // Predicated region
    $region14: #{multiscale_retention_forward.5} parent=1 // pred_check
      %p113 = pneg %p12
    $region15: #{multiscale_retention_forward.5} parent=1 // pred_check_branch
      %115 = sbr.rel (%p113) target = $region17
    $region16: #{multiscale_retention_forward.5} parent=1 // pred_region
      %v116 = vld [vmem:[#allocation2] sm:$0xff]
      %v117 = vld [vmem:[#allocation2 + $0x8] sm:$0xff]
      %118 = vst.msk [vmem:[#allocation3] sm:$0xff] %vm27, %v116
      %119 = vst.msk [vmem:[#allocation3 + $0x8] sm:$0xff] %vm27, %v117
    $region17: #{multiscale_retention_forward.5} parent=1 // pred_fallthru
      _
    // Predicated region
    $region18: #{multiscale_retention_forward.5} parent=1 // pred_check
      _
    $region19: #{multiscale_retention_forward.5} parent=1 // pred_check_branch
      %121 = sbr.rel (0) target = $region21
    $region20: #{multiscale_retention_forward.5} parent=1 // pred_region
      %s123 = ssub.s32 256, 256
      %124 = vsyncadd [#allocation4], %s123
      %s125 = sshll.u32 [#allocation3], 4
      %s126 = int_to_ptr.vmem [resolvable:$true] %s125
      %131 = dma.vmem_to_hbm [thread:$0]  %s126, 256, %s2, [#allocation4], 128, 128, 8
    $region21: #{multiscale_retention_forward.5} parent=1 // pred_fallthru
      _
    // Predicated region
    $region22: #{multiscale_retention_forward.5} parent=1 // pred_check
      _
    $region23: #{multiscale_retention_forward.5} parent=1 // pred_check_branch
      %133 = sbr.rel (0) target = $region25
    $region24: #{multiscale_retention_forward.5} parent=1 // pred_region
      %134 = dma.done [#allocation4], 256
    $region25: #{multiscale_retention_forward.5} parent=1 // pred_fallthru
      _
    %135 = vsyncpa [#allocation4], 1

// kernel: multiscale_retention_forward.4
$region0: #{multiscale_retention_forward.4}
  #allocation0 [shape = 'u32[]', space=smem, size = 0x4, offset = 0x4, fixed_abs, tag = 'smem constant byte address 0x4 - core index']
  #allocation1 [shape = 'u32[144,128]{1,0:T(1,128)}', space=vmem, size = 0x12000, scoped, tag = 'internal scratch']
  #allocation2 [shape = 'f32[4,8,8]{2,1,0:T(8,128)}', space=vmem, size = 0x4000, scoped, tag = 'scratch operand']
  #allocation3 [shape = 'f32[4,8,1]{2,1,0:T(8,128)}', space=vmem, size = 0x4000, scoped, tag = 'scratch operand']
  %s0 = inlined_call_operand.vmem [shape: f32[2,8,32], index: 0, kind: input, shape index: {}]
  %s1 = inlined_call_operand.vmem [shape: f32[2,8,32], index: 1, kind: input, shape index: {}]
  %s2 = inlined_call_operand.vmem [shape: f32[2,8,32], index: 2, kind: input, shape index: {}]
  %s3 = inlined_call_operand.vmem [shape: f32[2,8,32], index: 3, kind: input, shape index: {}]
  %s4 = inlined_call_operand.vmem [shape: f32[4], index: 4, kind: input, shape index: {}]
  %s5 = inlined_call_operand.vmem [shape: f32[2,8,32], index: 5, kind: output, shape index: {}]
  %s6 = sld [smem:[#allocation0]]
  $region69: #{multiscale_retention_forward.4} parent=0
    _
  %s8 = ssub.s32 1, %s6
  %s9 = scalar_select 0, %s8, %s6
  $region1: #{multiscale_retention_forward.4} parent=0
    #allocation4 [shape = 'u8[512]{0}', space=smem, size = 0x200, scoped, tag = 'input window, operand 4, single buffered']
    #allocation5 [shape = 's32[2]{0}', space=sflag, size = 0x8, scoped, tag = 'scoped memory for multiscale_retention_forward.4']
    %10 = vsyncpa [#allocation5], 0
    loop: start=0, step=1, limit=4
    $region2: #{multiscale_retention_forward.4} parent=1 // loop_pre_header
      _
    $region3: #{multiscale_retention_forward.4} parent=1 // loop_header
      %s12 = sphi 0, %s16
      %p13 = scmp.ge.s32.totalorder %s12, 4
      %s19 = sphi 0, %s38
      %s20 = sphi 0, %s34
      %s21 = sphi 0, %s30
      %s22 = sphi 0, %s19
      %s23 = sphi 0, %s20
      %s24 = sphi 0, %s21
      %s25 = sphi 0, %s22
      %s26 = sphi 0, %s23
      %s27 = sphi 0, %s24
      %s43 = sphi 0, %s45
      %s46 = sphi 0, %s43
      %s47 = sphi 0, %s46
      %s63 = sphi 0, %s47
      %s71 = sphi 0, %s73
      %s74 = sphi 0, %s71
      %s75 = sphi 0, %s74
      %s91 = sphi 0, %s75
      %s99 = sphi 0, %s101
      %s102 = sphi 0, %s99
      %s103 = sphi 0, %s102
      %s119 = sphi 0, %s103
      %s127 = sphi 0, %s129
      %s130 = sphi 0, %s127
      %s131 = sphi 0, %s130
      %s147 = sphi 0, %s131
      %s151 = sphi 0, %s151
      %s153 = sphi 0, %s151
      %s154 = sphi 0, %s153
      %s168 = sphi 0, %s154
      %s176 = sphi 0, %s178
      %s179 = sphi 0, %s176
      %s180 = sphi 0, %s179
      %s196 = sphi 0, %s180
    $region4: #{multiscale_retention_forward.4} parent=1 // loop_header_branch
      %15 = sbr.rel (%p13) target = $region8
    $region5: #{multiscale_retention_forward.4} parent=1 // loop_body
      %s17 = ssub.s32 %s12, 1
      %s18 = ssub.s32 %s12, 2
      %s28 = sadd.s32 1, %s21
      %p29 = scmp.ge.s32.totalorder %s28, 1
      %s30 = scalar_select %p29, 0, %s28
      %s31 = sadd.s32 1, %s20
      %s32 = scalar_select %p29, %s31, %s20
      %p33 = scmp.ge.s32.totalorder %s32, 1
      %s34 = scalar_select %p33, 0, %s32
      %s35 = sadd.s32 1, %s19
      %s36 = scalar_select %p33, %s35, %s19
      %p37 = scmp.ge.s32.totalorder %s36, 2
      %s38 = scalar_select %p37, 0, %s36
      %s39 = ssub.s32 %s19, %s38
      %s40 = ssub.s32 %s20, %s34
      %s41 = sor.u32 %s39, %s40
      %p42 = scmp.eq.s32.totalorder %s41, 0
      %s44 = sadd.s32 %s43, 1
      %s45 = scalar_select %p42, %s43, %s44
      %p48 = pneg %p42
      %p49 = scmp.eq.s32.totalorder %s12, 1
      %p50 = por %p48, %p49
      %p51 = scmp.ne.s32.totalorder %s43, %s46
      %p52 = scmp.eq.s32.totalorder %s12, 0
      %p53 = por %p51, %p52
      %p54 = scmp.ne.s32.totalorder %s43, %s46
      %p55 = scmp.eq.s32.totalorder %s17, 1
      %p56 = por %p54, %p55
      %p57 = scmp.ne.s32.totalorder %s46, %s47
      %p58 = scmp.eq.s32.totalorder %s17, 0
      %p59 = por %p57, %p58
      %p60 = scmp.ne.s32.totalorder %s46, %s47
      %p61 = scmp.eq.s32.totalorder %s18, 1
      %p62 = por %p60, %p61
      %p64 = scmp.ne.s32.totalorder %s47, %s63
      %p65 = scmp.eq.s32.totalorder %s18, 0
      %p66 = por %p64, %p65
      %s67 = ssub.s32 %s19, %s38
      %s68 = ssub.s32 %s21, %s30
      %s69 = sor.u32 %s67, %s68
      %p70 = scmp.eq.s32.totalorder %s69, 0
      %s72 = sadd.s32 %s71, 1
      %s73 = scalar_select %p70, %s71, %s72
      %p76 = pneg %p70
      %p77 = scmp.eq.s32.totalorder %s12, 1
      %p78 = por %p76, %p77
      %p79 = scmp.ne.s32.totalorder %s71, %s74
      %p80 = scmp.eq.s32.totalorder %s12, 0
      %p81 = por %p79, %p80
      %p82 = scmp.ne.s32.totalorder %s71, %s74
      %p83 = scmp.eq.s32.totalorder %s17, 1
      %p84 = por %p82, %p83
      %p85 = scmp.ne.s32.totalorder %s74, %s75
      %p86 = scmp.eq.s32.totalorder %s17, 0
      %p87 = por %p85, %p86
      %p88 = scmp.ne.s32.totalorder %s74, %s75
      %p89 = scmp.eq.s32.totalorder %s18, 1
      %p90 = por %p88, %p89
      %p92 = scmp.ne.s32.totalorder %s75, %s91
      %p93 = scmp.eq.s32.totalorder %s18, 0
      %p94 = por %p92, %p93
      %s95 = ssub.s32 %s19, %s38
      %s96 = ssub.s32 %s21, %s30
      %s97 = sor.u32 %s95, %s96
      %p98 = scmp.eq.s32.totalorder %s97, 0
      %s100 = sadd.s32 %s99, 1
      %s101 = scalar_select %p98, %s99, %s100
      %p104 = pneg %p98
      %p105 = scmp.eq.s32.totalorder %s12, 1
      %p106 = por %p104, %p105
      %p107 = scmp.ne.s32.totalorder %s99, %s102
      %p108 = scmp.eq.s32.totalorder %s12, 0
      %p109 = por %p107, %p108
      %p110 = scmp.ne.s32.totalorder %s99, %s102
      %p111 = scmp.eq.s32.totalorder %s17, 1
      %p112 = por %p110, %p111
      %p113 = scmp.ne.s32.totalorder %s102, %s103
      %p114 = scmp.eq.s32.totalorder %s17, 0
      %p115 = por %p113, %p114
      %p116 = scmp.ne.s32.totalorder %s102, %s103
      %p117 = scmp.eq.s32.totalorder %s18, 1
      %p118 = por %p116, %p117
      %p120 = scmp.ne.s32.totalorder %s103, %s119
      %p121 = scmp.eq.s32.totalorder %s18, 0
      %p122 = por %p120, %p121
      %s123 = ssub.s32 %s19, %s38
      %s124 = ssub.s32 %s20, %s34
      %s125 = sor.u32 %s123, %s124
      %p126 = scmp.eq.s32.totalorder %s125, 0
      %s128 = sadd.s32 %s127, 1
      %s129 = scalar_select %p126, %s127, %s128
      %p132 = pneg %p126
      %p133 = scmp.eq.s32.totalorder %s12, 1
      %p134 = por %p132, %p133
      %p135 = scmp.ne.s32.totalorder %s127, %s130
      %p136 = scmp.eq.s32.totalorder %s12, 0
      %p137 = por %p135, %p136
      %p138 = scmp.ne.s32.totalorder %s127, %s130
      %p139 = scmp.eq.s32.totalorder %s17, 1
      %p140 = por %p138, %p139
      %p141 = scmp.ne.s32.totalorder %s130, %s131
      %p142 = scmp.eq.s32.totalorder %s17, 0
      %p143 = por %p141, %p142
      %p144 = scmp.ne.s32.totalorder %s130, %s131
      %p145 = scmp.eq.s32.totalorder %s18, 1
      %p146 = por %p144, %p145
      %p148 = scmp.ne.s32.totalorder %s131, %s147
      %p149 = scmp.eq.s32.totalorder %s18, 0
      %p150 = por %p148, %p149
      %s152 = sadd.s32 %s151, 1
      %p155 = scmp.eq.s32.totalorder %s12, 1
      %p156 = scmp.ne.s32.totalorder %s151, %s153
      %p157 = scmp.eq.s32.totalorder %s12, 0
      %p158 = por %p156, %p157
      %p159 = scmp.ne.s32.totalorder %s151, %s153
      %p160 = scmp.eq.s32.totalorder %s17, 1
      %p161 = por %p159, %p160
      %p162 = scmp.ne.s32.totalorder %s153, %s154
      %p163 = scmp.eq.s32.totalorder %s17, 0
      %p164 = por %p162, %p163
      %p165 = scmp.ne.s32.totalorder %s153, %s154
      %p166 = scmp.eq.s32.totalorder %s18, 1
      %p167 = por %p165, %p166
      %p169 = scmp.ne.s32.totalorder %s154, %s168
      %p170 = scmp.eq.s32.totalorder %s18, 0
      %p171 = por %p169, %p170
      %s172 = ssub.s32 %s19, %s38
      %s173 = ssub.s32 %s20, %s34
      %s174 = sor.u32 %s172, %s173
      %p175 = scmp.eq.s32.totalorder %s174, 0
      %s177 = sadd.s32 %s176, 1
      %s178 = scalar_select %p175, %s176, %s177
      %p181 = pneg %p175
      %p182 = scmp.eq.s32.totalorder %s12, 1
      %p183 = por %p181, %p182
      %p184 = scmp.ne.s32.totalorder %s176, %s179
      %p185 = scmp.eq.s32.totalorder %s12, 0
      %p186 = por %p184, %p185
      %p187 = scmp.ne.s32.totalorder %s176, %s179
      %p188 = scmp.eq.s32.totalorder %s17, 1
      %p189 = por %p187, %p188
      %p190 = scmp.ne.s32.totalorder %s179, %s180
      %p191 = scmp.eq.s32.totalorder %s17, 0
      %p192 = por %p190, %p191
      %p193 = scmp.ne.s32.totalorder %s179, %s180
      %p194 = scmp.eq.s32.totalorder %s18, 1
      %p195 = por %p193, %p194
      %p197 = scmp.ne.s32.totalorder %s180, %s196
      %p198 = scmp.eq.s32.totalorder %s18, 0
      %p199 = por %p197, %p198
      %p200 = scmp.le.s32.totalorder 1, %s12
      %p201 = scmp.lt.s32.totalorder %s12, 3
      %p202 = pnand %p200, %p201
      %p203 = pneg %p202
      // Predicated region
      $region9: #{multiscale_retention_forward.4} parent=5 // pred_check
        _
      $region10: #{multiscale_retention_forward.4} parent=5 // pred_check_branch
        %205 = sbr.rel (%p202) target = $region12
      $region11: #{multiscale_retention_forward.4} parent=5 // pred_region
        %s206 = ssub.s32 %s12, 1
        // Predicated region
        $region13: #{multiscale_retention_forward.4} parent=11 // pred_check
          %p207 = pneg %p164
        $region14: #{multiscale_retention_forward.4} parent=11 // pred_check_branch
          %209 = sbr.rel (%p207) target = $region16
        $region15: #{multiscale_retention_forward.4} parent=11 // pred_region
          %s211 = ssub.s32 16, 16
          %212 = vsyncadd [#allocation5], %s211
          %s214 = sshll.u32 %s4, 4
          %s215 = int_to_ptr.vmem [resolvable:$true] %s214
          %217 = dma.vmem_to_smem %s215, 16, [#allocation4], [#allocation5]
        $region16: #{multiscale_retention_forward.4} parent=11 // pred_fallthru
          _
      $region12: #{multiscale_retention_forward.4} parent=5 // pred_fallthru
        _
      %p218 = scmp.lt.s32.totalorder %s12, 2
      // Predicated region
      $region17: #{multiscale_retention_forward.4} parent=5 // pred_check
        %p219 = pneg %p218
      $region18: #{multiscale_retention_forward.4} parent=5 // pred_check_branch
        %221 = sbr.rel (%p219) target = $region20
      $region19: #{multiscale_retention_forward.4} parent=5 // pred_region
        // Predicated region
        $region21: #{multiscale_retention_forward.4} parent=19 // pred_check
          %p222 = pneg %p53
        $region22: #{multiscale_retention_forward.4} parent=19 // pred_check_branch
          %224 = sbr.rel (%p222) target = $region24
        $region23: #{multiscale_retention_forward.4} parent=19 // pred_region
          %p225 = scmp.lt.s32.totalorder %s19, 1
          %s226 = scalar_select %p225, %s19, 1
          %p227 = scmp.lt.s32.totalorder %s20, 0
          %s228 = scalar_select %p227, %s20, 0
          %s229 = sadd.s32 %s228, %s226
          %s230 = smul.addr %s229, 8
          %s231 = scalar_lea.vmem %s0, %s230
        $region24: #{multiscale_retention_forward.4} parent=19 // pred_fallthru
          _
        // Predicated region
        $region25: #{multiscale_retention_forward.4} parent=19 // pred_check
          %p232 = pneg %p81
        $region26: #{multiscale_retention_forward.4} parent=19 // pred_check_branch
          %234 = sbr.rel (%p232) target = $region28
        $region27: #{multiscale_retention_forward.4} parent=19 // pred_region
          %p235 = scmp.lt.s32.totalorder %s19, 1
          %s236 = scalar_select %p235, %s19, 1
          %p237 = scmp.lt.s32.totalorder %s21, 0
          %s238 = scalar_select %p237, %s21, 0
          %s239 = sadd.s32 %s238, %s236
          %s240 = smul.addr %s239, 8
          %s241 = scalar_lea.vmem %s1, %s240
        $region28: #{multiscale_retention_forward.4} parent=19 // pred_fallthru
          _
        // Predicated region
        $region29: #{multiscale_retention_forward.4} parent=19 // pred_check
          %p242 = pneg %p109
        $region30: #{multiscale_retention_forward.4} parent=19 // pred_check_branch
          %244 = sbr.rel (%p242) target = $region32
        $region31: #{multiscale_retention_forward.4} parent=19 // pred_region
          %p245 = scmp.lt.s32.totalorder %s19, 1
          %s246 = scalar_select %p245, %s19, 1
          %p247 = scmp.lt.s32.totalorder %s21, 0
          %s248 = scalar_select %p247, %s21, 0
          %s249 = sadd.s32 %s248, %s246
          %s250 = smul.addr %s249, 8
          %s251 = scalar_lea.vmem %s2, %s250
        $region32: #{multiscale_retention_forward.4} parent=19 // pred_fallthru
          _
        // Predicated region
        $region33: #{multiscale_retention_forward.4} parent=19 // pred_check
          %p252 = pneg %p137
        $region34: #{multiscale_retention_forward.4} parent=19 // pred_check_branch
          %254 = sbr.rel (%p252) target = $region36
        $region35: #{multiscale_retention_forward.4} parent=19 // pred_region
          %p255 = scmp.lt.s32.totalorder %s19, 1
          %s256 = scalar_select %p255, %s19, 1
          %p257 = scmp.lt.s32.totalorder %s20, 0
          %s258 = scalar_select %p257, %s20, 0
          %s259 = sadd.s32 %s258, %s256
          %s260 = smul.addr %s259, 8
          %s261 = scalar_lea.vmem %s3, %s260
        $region36: #{multiscale_retention_forward.4} parent=19 // pred_fallthru
          _
      $region20: #{multiscale_retention_forward.4} parent=5 // pred_fallthru
        _
      %p262 = scmp.le.s32.totalorder 1, %s12
      %p263 = scmp.lt.s32.totalorder %s12, 3
      %p264 = pnand %p262, %p263
      %p265 = pneg %p264
      // Predicated region
      $region37: #{multiscale_retention_forward.4} parent=5 // pred_check
        _
      $region38: #{multiscale_retention_forward.4} parent=5 // pred_check_branch
        %267 = sbr.rel (%p264) target = $region40
      $region39: #{multiscale_retention_forward.4} parent=5 // pred_region
        %s268 = ssub.s32 %s12, 1
        // Predicated region
        $region41: #{multiscale_retention_forward.4} parent=39 // pred_check
          %p269 = pneg %p164
        $region42: #{multiscale_retention_forward.4} parent=39 // pred_check_branch
          %271 = sbr.rel (%p269) target = $region44
        $region43: #{multiscale_retention_forward.4} parent=39 // pred_region
          %272 = dma.done [#allocation5], 16
        $region44: #{multiscale_retention_forward.4} parent=39 // pred_fallthru
          _
        %273 = sfence
        %p274 = scmp.lt.s32.totalorder %s22, 1
        %s275 = scalar_select %p274, %s22, 1
        %p276 = scmp.lt.s32.totalorder %s23, 0
        %s277 = scalar_select %p276, %s23, 0
        %s278 = sadd.s32 %s277, %s275
        %s279 = smul.addr %s278, 8
        %s280 = scalar_lea.vmem %s0, %s279
        %p281 = pneg %p59
        %p282 = pneg %p56
        %p283 = scmp.lt.s32.totalorder %s22, 1
        %s284 = scalar_select %p283, %s22, 1
        %p285 = scmp.lt.s32.totalorder %s24, 0
        %s286 = scalar_select %p285, %s24, 0
        %s287 = sadd.s32 %s286, %s284
        %s288 = smul.addr %s287, 8
        %s289 = scalar_lea.vmem %s1, %s288
        %p290 = pneg %p87
        %p291 = pneg %p84
        %p292 = scmp.lt.s32.totalorder %s22, 1
        %s293 = scalar_select %p292, %s22, 1
        %p294 = scmp.lt.s32.totalorder %s24, 0
        %s295 = scalar_select %p294, %s24, 0
        %s296 = sadd.s32 %s295, %s293
        %s297 = smul.addr %s296, 8
        %s298 = scalar_lea.vmem %s2, %s297
        %p299 = pneg %p115
        %p300 = pneg %p112
        %p301 = scmp.lt.s32.totalorder %s22, 1
        %s302 = scalar_select %p301, %s22, 1
        %p303 = scmp.lt.s32.totalorder %s23, 0
        %s304 = scalar_select %p303, %s23, 0
        %s305 = sadd.s32 %s304, %s302
        %s306 = smul.addr %s305, 8
        %s307 = scalar_lea.vmem %s3, %s306
        %p308 = pneg %p143
        %p309 = pneg %p140
        %p310 = pneg %p164
        %p311 = pneg %p161
        %p312 = pneg %p192
        %p313 = pneg %p189
        %p314 = scmp.lt.s32.totalorder %s22, 1
        %s315 = scalar_select %p314, %s22, 1
        %p316 = scmp.lt.s32.totalorder %s23, 0
        %s317 = scalar_select %p316, %s23, 0
        %s318 = sadd.s32 %s317, %s315
        %s319 = smul.addr %s318, 8
        %s320 = scalar_lea.vmem %s5, %s319
        %p321 = scmp.lt.s32.totalorder %s22, 1
        %s322 = scalar_select %p321, %s22, 1
        %p323 = scmp.lt.s32.totalorder %s23, 0
        %s324 = scalar_select %p323, %s23, 0
        %s325 = sadd.s32 %s324, %s322
        %s326 = smul.addr %s325, 8
        %s327 = scalar_lea.vmem %s0, %s326
        %p328 = scmp.lt.s32.totalorder %s22, 1
        %s329 = scalar_select %p328, %s22, 1
        %p330 = scmp.lt.s32.totalorder %s24, 0
        %s331 = scalar_select %p330, %s24, 0
        %s332 = sadd.s32 %s331, %s329
        %s333 = smul.addr %s332, 8
        %s334 = scalar_lea.vmem %s1, %s333
        %p335 = scmp.lt.s32.totalorder %s22, 1
        %s336 = scalar_select %p335, %s22, 1
        %p337 = scmp.lt.s32.totalorder %s24, 0
        %s338 = scalar_select %p337, %s24, 0
        %s339 = sadd.s32 %s338, %s336
        %s340 = smul.addr %s339, 8
        %s341 = scalar_lea.vmem %s2, %s340
        %p342 = scmp.lt.s32.totalorder %s22, 1
        %s343 = scalar_select %p342, %s22, 1
        %p344 = scmp.lt.s32.totalorder %s23, 0
        %s345 = scalar_select %p344, %s23, 0
        %s346 = sadd.s32 %s345, %s343
        %s347 = smul.addr %s346, 8
        %s348 = scalar_lea.vmem %s3, %s347
        %p349 = scmp.lt.s32.totalorder %s22, 1
        %s350 = scalar_select %p349, %s22, 1
        %p351 = scmp.lt.s32.totalorder %s23, 0
        %s352 = scalar_select %p351, %s23, 0
        %s353 = sadd.s32 %s352, %s350
        %s354 = smul.addr %s353, 8
        %s355 = scalar_lea.vmem %s5, %s354
        %s356 = smul.u32 %s23, 8
        %s357 = smul.u32 %s24, 8
        %p358 = scmp.eq.s32.totalorder %s24, 0
        // Predicated region
        $region45: #{multiscale_retention_forward.4} parent=39 // pred_check
          %p359 = pneg %p358
        $region46: #{multiscale_retention_forward.4} parent=39 // pred_check_branch
          %361 = sbr.rel (%p359) target = $region48
        $region47: #{multiscale_retention_forward.4} parent=39 // pred_region
          %vm362 = vcmask 64512
          %363 = vst.msk [vmem:[#allocation2] sm:$0xff] %vm362, 0.0
          %364 = vst.msk [vmem:[#allocation2 + $0x8] sm:$0xff] %vm362, 0.0
          %365 = vst.msk [vmem:[#allocation2 + $0x10] sm:$0xff] %vm362, 0.0
          %366 = vst.msk [vmem:[#allocation2 + $0x18] sm:$0xff] %vm362, 0.0
          %vm367 = vcmask 7168
          %368 = vst.msk [vmem:[#allocation3] sm:$0xff] %vm367, 0.0
          %369 = vst.msk [vmem:[#allocation3 + $0x8] sm:$0xff] %vm367, 0.0
          %370 = vst.msk [vmem:[#allocation3 + $0x10] sm:$0xff] %vm367, 0.0
          %371 = vst.msk [vmem:[#allocation3 + $0x18] sm:$0xff] %vm367, 0.0
        $region48: #{multiscale_retention_forward.4} parent=39 // pred_fallthru
          _
        %s372 = sadd.s32 %s356, 8
        %p373 = scmp.lt.s32.totalorder %s357, %s372
        // Predicated region
        $region49: #{multiscale_retention_forward.4} parent=39 // pred_check
          %p374 = pneg %p373
        $region50: #{multiscale_retention_forward.4} parent=39 // pred_check_branch
          %376 = sbr.rel (%p374) target = $region52
        $region51: #{multiscale_retention_forward.4} parent=39 // pred_region
          %v377 = vld [vmem:[%s327] sm:$0xff]
          %v378 = vld [vmem:[%s334] sm:$0xff]
          %v379 = vld [vmem:[%s341] sm:$0xff]
          %v380 = vlaneseq
          %v381 = vshrl.u32 %v380, 7
          %v382 = vlaneseq
          %v383 = vand.u32 %v382, 127
          %v384 = vstv %s356
          %v385 = vadd.s32 %v384, %v381
          %v386 = vstv %s357
          %v387 = vadd.s32 %v386, %v383
          %vm388 = vcmp.ge.s32.totalorder %v385, %v387
          %v389 = vsub.s32 %v385, %v387
          %v390 = vcvt.s32.f32 %v389
          %v391 = vsel %vm388, %v390, 0.0
          %s392 = sld [smem:[#allocation4]]
          %v393 = vstv %s392
          %v394 = vmul.f32 %v391, %v393
          %v395 = vmul.f32 %v394, 1.442695
          %v396 = vpow.pop %v395
          %v397 = vsel %vm388, %v396, 0.0
          %vm398 = vcmask 64512
          %v400 = vsel %vm398, %v377, 0
          %v403 = vsel %vm398, %v378, 0
          %405 = vmatprep.subr.mxu0 0.0
          %406 = vmatpush1.xpose.msra.mxu0 0.0
          %407 = vmatprep.subr.mxu0 0.0
          %408 = vmatpush1.xpose.msra.mxu0 0.0
          %409 = vmatprep.subr.mxu0 0.0
          %410 = vmatpush1.xpose.msra.mxu0 0.0
          %411 = vmatprep.subr.mxu0 0.0
          %412 = vmatpush1.xpose.msra.mxu0 0.0
          %413 = vmatprep.subr.mxu0 0.0
          %414 = vmatpush1.xpose.msra.mxu0 0.0
          %415 = vmatprep.subr.mxu0 0.0
          %416 = vmatpush1.xpose.msra.mxu0 0.0
          %417 = vmatprep.subr.mxu0 0.0
          %418 = vmatpush1.xpose.msra.mxu0 0.0
          %419 = vmatprep.subr.mxu0 0.0
          %420 = vmatpush1.xpose.msra.mxu0 0.0
          %421 = vmatprep.subr.mxu0 0.0
          %422 = vmatpush1.xpose.msra.mxu0 0.0
          %423 = vmatprep.subr.mxu0 0.0
          %424 = vmatpush1.xpose.msra.mxu0 0.0
          %425 = vmatprep.subr.mxu0 0.0
          %426 = vmatpush1.xpose.msra.mxu0 0.0
          %427 = vmatprep.subr.mxu0 0.0
          %428 = vmatpush1.xpose.msra.mxu0 0.0
          %429 = vmatprep.subr.mxu0 0.0
          %430 = vmatpush1.xpose.msra.mxu0 0.0
          %431 = vmatprep.subr.mxu0 0.0
          %432 = vmatpush1.xpose.msra.mxu0 0.0
          %433 = vmatprep.subr.mxu0 0.0
          %434 = vmatpush1.xpose.msra.mxu0 0.0
          %435 = vmatprep.subr.mxu0 0.0
          %436 = vmatpush1.xpose.msra.mxu0 %v403
          %437 = vmatprep.subr.mxu0 0.0
          %438 = vmatpush2.xpose.msra.mxu0 0.0
          %439 = vmatprep.subr.mxu0 0.0
          %440 = vmatpush2.xpose.msra.mxu0 0.0
          %441 = vmatprep.subr.mxu0 0.0
          %442 = vmatpush2.xpose.msra.mxu0 0.0
          %443 = vmatprep.subr.mxu0 0.0
          %444 = vmatpush2.xpose.msra.mxu0 0.0
          %445 = vmatprep.subr.mxu0 0.0
          %446 = vmatpush2.xpose.msra.mxu0 0.0
          %447 = vmatprep.subr.mxu0 0.0
          %448 = vmatpush2.xpose.msra.mxu0 0.0
          %449 = vmatprep.subr.mxu0 0.0
          %450 = vmatpush2.xpose.msra.mxu0 0.0
          %451 = vmatprep.subr.mxu0 0.0
          %452 = vmatpush2.xpose.msra.mxu0 0.0
          %453 = vmatprep.subr.mxu0 0.0
          %454 = vmatpush2.xpose.msra.mxu0 0.0
          %455 = vmatprep.subr.mxu0 0.0
          %456 = vmatpush2.xpose.msra.mxu0 0.0
          %457 = vmatprep.subr.mxu0 0.0
          %458 = vmatpush2.xpose.msra.mxu0 0.0
          %459 = vmatprep.subr.mxu0 0.0
          %460 = vmatpush2.xpose.msra.mxu0 0.0
          %461 = vmatprep.subr.mxu0 0.0
          %462 = vmatpush2.xpose.msra.mxu0 0.0
          %463 = vmatprep.subr.mxu0 0.0
          %464 = vmatpush2.xpose.msra.mxu0 0.0
          %465 = vmatprep.subr.mxu0 0.0
          %466 = vmatpush2.xpose.msra.mxu0 0.0
          %467 = vmatprep.subr.mxu0 0.0
          %468 = vmatpush2.xpose.msra.mxu0 0.0
          %469 = vmatprep.mubr.f32.mxu0 0.0
          %470 = vmatmul.mubr.f32.gmra.mxu0 %v400
          %v471 = vpop.f32.mrf.mxu0
          %v472 = vadd.f32 0.0, %v471
          %v473 = vpop.f32.mrf.mxu0
          %474 = vdwg.mxu0
          %v475 = vmul.f32 %v472, %v397
          %v476 = vld [vmem:[#allocation3] sm:$0xff]
          %v477 = vand.u32 2147483647, %v475
          %v478 = vsel %vm398, %v477, 0.0
          %479 = vadd.xlane.f32.xlu0 %v478
          %v480 = vpop.xlane.xlu0 %479
          %v481 = vadd.f32 %v476, %v480
          %vm482 = vcmask 7168
          %483 = vst.msk [vmem:[#allocation3] sm:$0xff] %vm482, %v481
          %v484 = vld [vmem:[#allocation2] sm:$0xff]
          %v486 = vsel %vm398, %v475, 0
          %488 = vmatprep.subr.mxu0 0.0
          %489 = vmatpush1.msra.mxu0 0.0
          %490 = vmatprep.subr.mxu0 0.0
          %491 = vmatpush1.msra.mxu0 0.0
          %492 = vmatprep.subr.mxu0 0.0
          %493 = vmatpush1.msra.mxu0 0.0
          %494 = vmatprep.subr.mxu0 0.0
          %495 = vmatpush1.msra.mxu0 0.0
          %496 = vmatprep.subr.mxu0 0.0
          %497 = vmatpush1.msra.mxu0 0.0
          %498 = vmatprep.subr.mxu0 0.0
          %499 = vmatpush1.msra.mxu0 0.0
          %500 = vmatprep.subr.mxu0 0.0
          %501 = vmatpush1.msra.mxu0 0.0
          %502 = vmatprep.subr.mxu0 0.0
          %503 = vmatpush1.msra.mxu0 0.0
          %504 = vmatprep.subr.mxu0 0.0
          %505 = vmatpush1.msra.mxu0 0.0
          %506 = vmatprep.subr.mxu0 0.0
          %507 = vmatpush1.msra.mxu0 0.0
          %508 = vmatprep.subr.mxu0 0.0
          %509 = vmatpush1.msra.mxu0 0.0
          %510 = vmatprep.subr.mxu0 0.0
          %511 = vmatpush1.msra.mxu0 0.0
          %512 = vmatprep.subr.mxu0 0.0
          %513 = vmatpush1.msra.mxu0 0.0
          %514 = vmatprep.subr.mxu0 0.0
          %515 = vmatpush1.msra.mxu0 0.0
          %516 = vmatprep.subr.mxu0 0.0
          %517 = vmatpush1.msra.mxu0 0.0
          %518 = vmatprep.subr.mxu0 0.0
          %519 = vmatpush1.msra.mxu0 %v379
          %520 = vmatprep.subr.mxu0 0.0
          %521 = vmatpush2.msra.mxu0 0.0
          %522 = vmatprep.subr.mxu0 0.0
          %523 = vmatpush2.msra.mxu0 0.0
          %524 = vmatprep.subr.mxu0 0.0
          %525 = vmatpush2.msra.mxu0 0.0
          %526 = vmatprep.subr.mxu0 0.0
          %527 = vmatpush2.msra.mxu0 0.0
          %528 = vmatprep.subr.mxu0 0.0
          %529 = vmatpush2.msra.mxu0 0.0
          %530 = vmatprep.subr.mxu0 0.0
          %531 = vmatpush2.msra.mxu0 0.0
          %532 = vmatprep.subr.mxu0 0.0
          %533 = vmatpush2.msra.mxu0 0.0
          %534 = vmatprep.subr.mxu0 0.0
          %535 = vmatpush2.msra.mxu0 0.0
          %536 = vmatprep.subr.mxu0 0.0
          %537 = vmatpush2.msra.mxu0 0.0
          %538 = vmatprep.subr.mxu0 0.0
          %539 = vmatpush2.msra.mxu0 0.0
          %540 = vmatprep.subr.mxu0 0.0
          %541 = vmatpush2.msra.mxu0 0.0
          %542 = vmatprep.subr.mxu0 0.0
          %543 = vmatpush2.msra.mxu0 0.0
          %544 = vmatprep.subr.mxu0 0.0
          %545 = vmatpush2.msra.mxu0 0.0
          %546 = vmatprep.subr.mxu0 0.0
          %547 = vmatpush2.msra.mxu0 0.0
          %548 = vmatprep.subr.mxu0 0.0
          %549 = vmatpush2.msra.mxu0 0.0
          %550 = vmatprep.subr.mxu0 0.0
          %551 = vmatpush2.msra.mxu0 0.0
          %552 = vmatprep.mubr.f32.mxu0 0.0
          %553 = vmatmul.mubr.f32.gmra.mxu0 %v486
          %v554 = vpop.f32.mrf.mxu0
          %v555 = vadd.f32 0.0, %v554
          %v556 = vpop.f32.mrf.mxu0
          %557 = vdwg.mxu0
          %v558 = vadd.f32 %v484, %v555
          %559 = vst.msk [vmem:[#allocation2] sm:$0xff] %vm398, %v558
          %s560 = sld [smem:[#allocation4 + $0x1]]
          %v561 = vstv %s560
          %v562 = vmul.f32 %v391, %v561
          %v563 = vmul.f32 %v562, 1.442695
          %v564 = vpow.pop %v563
          %v565 = vsel %vm388, %v564, 0.0
          %566 = vrot.lane.b32.xlu0 %v377, 120
          %v567 = vpop.permute.xlu0 %566
          %568 = vrot.lane.b32.xlu0 %v378, 120
          %v569 = vpop.permute.xlu0 %568
          %v570 = vsel %vm398, %v567, 0
          %v572 = vsel %vm398, %v569, 0
          %574 = vmatprep.subr.mxu0 0.0
          %575 = vmatpush1.xpose.msra.mxu0 0.0
          %576 = vmatprep.subr.mxu0 0.0
          %577 = vmatpush1.xpose.msra.mxu0 0.0
          %578 = vmatprep.subr.mxu0 0.0
          %579 = vmatpush1.xpose.msra.mxu0 0.0
          %580 = vmatprep.subr.mxu0 0.0
          %581 = vmatpush1.xpose.msra.mxu0 0.0
          %582 = vmatprep.subr.mxu0 0.0
          %583 = vmatpush1.xpose.msra.mxu0 0.0
          %584 = vmatprep.subr.mxu0 0.0
          %585 = vmatpush1.xpose.msra.mxu0 0.0
          %586 = vmatprep.subr.mxu0 0.0
          %587 = vmatpush1.xpose.msra.mxu0 0.0
          %588 = vmatprep.subr.mxu0 0.0
          %589 = vmatpush1.xpose.msra.mxu0 0.0
          %590 = vmatprep.subr.mxu0 0.0
          %591 = vmatpush1.xpose.msra.mxu0 0.0
          %592 = vmatprep.subr.mxu0 0.0
          %593 = vmatpush1.xpose.msra.mxu0 0.0
          %594 = vmatprep.subr.mxu0 0.0
          %595 = vmatpush1.xpose.msra.mxu0 0.0
          %596 = vmatprep.subr.mxu0 0.0
          %597 = vmatpush1.xpose.msra.mxu0 0.0
          %598 = vmatprep.subr.mxu0 0.0
          %599 = vmatpush1.xpose.msra.mxu0 0.0
          %600 = vmatprep.subr.mxu0 0.0
          %601 = vmatpush1.xpose.msra.mxu0 0.0
          %602 = vmatprep.subr.mxu0 0.0
          %603 = vmatpush1.xpose.msra.mxu0 0.0
          %604 = vmatprep.subr.mxu0 0.0
          %605 = vmatpush1.xpose.msra.mxu0 %v572
          %606 = vmatprep.subr.mxu0 0.0
          %607 = vmatpush2.xpose.msra.mxu0 0.0
          %608 = vmatprep.subr.mxu0 0.0
          %609 = vmatpush2.xpose.msra.mxu0 0.0
          %610 = vmatprep.subr.mxu0 0.0
          %611 = vmatpush2.xpose.msra.mxu0 0.0
          %612 = vmatprep.subr.mxu0 0.0
          %613 = vmatpush2.xpose.msra.mxu0 0.0
          %614 = vmatprep.subr.mxu0 0.0
          %615 = vmatpush2.xpose.msra.mxu0 0.0
          %616 = vmatprep.subr.mxu0 0.0
          %617 = vmatpush2.xpose.msra.mxu0 0.0
          %618 = vmatprep.subr.mxu0 0.0
          %619 = vmatpush2.xpose.msra.mxu0 0.0
          %620 = vmatprep.subr.mxu0 0.0
          %621 = vmatpush2.xpose.msra.mxu0 0.0
          %622 = vmatprep.subr.mxu0 0.0
          %623 = vmatpush2.xpose.msra.mxu0 0.0
          %624 = vmatprep.subr.mxu0 0.0
          %625 = vmatpush2.xpose.msra.mxu0 0.0
          %626 = vmatprep.subr.mxu0 0.0
          %627 = vmatpush2.xpose.msra.mxu0 0.0
          %628 = vmatprep.subr.mxu0 0.0
          %629 = vmatpush2.xpose.msra.mxu0 0.0
          %630 = vmatprep.subr.mxu0 0.0
          %631 = vmatpush2.xpose.msra.mxu0 0.0
          %632 = vmatprep.subr.mxu0 0.0
          %633 = vmatpush2.xpose.msra.mxu0 0.0
          %634 = vmatprep.subr.mxu0 0.0
          %635 = vmatpush2.xpose.msra.mxu0 0.0
          %636 = vmatprep.subr.mxu0 0.0
          %637 = vmatpush2.xpose.msra.mxu0 0.0
          %638 = vmatprep.mubr.f32.mxu0 0.0
          %639 = vmatmul.mubr.f32.gmra.mxu0 %v570
          %v640 = vpop.f32.mrf.mxu0
          %v641 = vadd.f32 0.0, %v640
          %v642 = vpop.f32.mrf.mxu0
          %643 = vdwg.mxu0
          %v644 = vmul.f32 %v641, %v565
          %s645 = scalar_lea.vmem [#allocation3], 8
          %v646 = vld [vmem:[%s645] sm:$0xff]
          %v647 = vand.u32 2147483647, %v644
          %v648 = vsel %vm398, %v647, 0.0
          %649 = vadd.xlane.f32.xlu0 %v648
          %v650 = vpop.xlane.xlu0 %649
          %v651 = vadd.f32 %v646, %v650
          %652 = vst.msk [vmem:[%s645] sm:$0xff] %vm482, %v651
          %s653 = scalar_lea.vmem [#allocation2], 8
          %v654 = vld [vmem:[%s653] sm:$0xff]
          %656 = vrot.lane.b32.xlu0 %v379, 120
          %v657 = vpop.permute.xlu0 %656
          %v660 = vsel %vm398, %v644, 0
          %662 = vmatprep.subr.mxu0 0.0
          %663 = vmatpush1.msra.mxu0 0.0
          %664 = vmatprep.subr.mxu0 0.0
          %665 = vmatpush1.msra.mxu0 0.0
          %666 = vmatprep.subr.mxu0 0.0
          %667 = vmatpush1.msra.mxu0 0.0
          %668 = vmatprep.subr.mxu0 0.0
          %669 = vmatpush1.msra.mxu0 0.0
          %670 = vmatprep.subr.mxu0 0.0
          %671 = vmatpush1.msra.mxu0 0.0
          %672 = vmatprep.subr.mxu0 0.0
          %673 = vmatpush1.msra.mxu0 0.0
          %674 = vmatprep.subr.mxu0 0.0
          %675 = vmatpush1.msra.mxu0 0.0
          %676 = vmatprep.subr.mxu0 0.0
          %677 = vmatpush1.msra.mxu0 0.0
          %678 = vmatprep.subr.mxu0 0.0
          %679 = vmatpush1.msra.mxu0 0.0
          %680 = vmatprep.subr.mxu0 0.0
          %681 = vmatpush1.msra.mxu0 0.0
          %682 = vmatprep.subr.mxu0 0.0
          %683 = vmatpush1.msra.mxu0 0.0
          %684 = vmatprep.subr.mxu0 0.0
          %685 = vmatpush1.msra.mxu0 0.0
          %686 = vmatprep.subr.mxu0 0.0
          %687 = vmatpush1.msra.mxu0 0.0
          %688 = vmatprep.subr.mxu0 0.0
          %689 = vmatpush1.msra.mxu0 0.0
          %690 = vmatprep.subr.mxu0 0.0
          %691 = vmatpush1.msra.mxu0 0.0
          %692 = vmatprep.subr.mxu0 0.0
          %693 = vmatpush1.msra.mxu0 %v657
          %694 = vmatprep.subr.mxu0 0.0
          %695 = vmatpush2.msra.mxu0 0.0
          %696 = vmatprep.subr.mxu0 0.0
          %697 = vmatpush2.msra.mxu0 0.0
          %698 = vmatprep.subr.mxu0 0.0
          %699 = vmatpush2.msra.mxu0 0.0
          %700 = vmatprep.subr.mxu0 0.0
          %701 = vmatpush2.msra.mxu0 0.0
          %702 = vmatprep.subr.mxu0 0.0
          %703 = vmatpush2.msra.mxu0 0.0
          %704 = vmatprep.subr.mxu0 0.0
          %705 = vmatpush2.msra.mxu0 0.0
          %706 = vmatprep.subr.mxu0 0.0
          %707 = vmatpush2.msra.mxu0 0.0
          %708 = vmatprep.subr.mxu0 0.0
          %709 = vmatpush2.msra.mxu0 0.0
          %710 = vmatprep.subr.mxu0 0.0
          %711 = vmatpush2.msra.mxu0 0.0
          %712 = vmatprep.subr.mxu0 0.0
          %713 = vmatpush2.msra.mxu0 0.0
          %714 = vmatprep.subr.mxu0 0.0
          %715 = vmatpush2.msra.mxu0 0.0
          %716 = vmatprep.subr.mxu0 0.0
          %717 = vmatpush2.msra.mxu0 0.0
          %718 = vmatprep.subr.mxu0 0.0
          %719 = vmatpush2.msra.mxu0 0.0
          %720 = vmatprep.subr.mxu0 0.0
          %721 = vmatpush2.msra.mxu0 0.0
          %722 = vmatprep.subr.mxu0 0.0
          %723 = vmatpush2.msra.mxu0 0.0
          %724 = vmatprep.subr.mxu0 0.0
          %725 = vmatpush2.msra.mxu0 0.0
          %726 = vmatprep.mubr.f32.mxu0 0.0
          %727 = vmatmul.mubr.f32.gmra.mxu0 %v660
          %v728 = vpop.f32.mrf.mxu0
          %v729 = vadd.f32 0.0, %v728
          %v730 = vpop.f32.mrf.mxu0
          %731 = vdwg.mxu0
          %v732 = vadd.f32 %v654, %v729
          %733 = vst.msk [vmem:[%s653] sm:$0xff] %vm398, %v732
          %s734 = sld [smem:[#allocation4 + $0x2]]
          %v735 = vstv %s734
          %v736 = vmul.f32 %v391, %v735
          %v737 = vmul.f32 %v736, 1.442695
          %v738 = vpow.pop %v737
          %v739 = vsel %vm388, %v738, 0.0
          %740 = vrot.lane.b32.xlu0 %v377, 112
          %v741 = vpop.permute.xlu0 %740
          %742 = vrot.lane.b32.xlu0 %v378, 112
          %v743 = vpop.permute.xlu0 %742
          %v744 = vsel %vm398, %v741, 0
          %v746 = vsel %vm398, %v743, 0
          %748 = vmatprep.subr.mxu0 0.0
          %749 = vmatpush1.xpose.msra.mxu0 0.0
          %750 = vmatprep.subr.mxu0 0.0
          %751 = vmatpush1.xpose.msra.mxu0 0.0
          %752 = vmatprep.subr.mxu0 0.0
          %753 = vmatpush1.xpose.msra.mxu0 0.0
          %754 = vmatprep.subr.mxu0 0.0
          %755 = vmatpush1.xpose.msra.mxu0 0.0
          %756 = vmatprep.subr.mxu0 0.0
          %757 = vmatpush1.xpose.msra.mxu0 0.0
          %758 = vmatprep.subr.mxu0 0.0
          %759 = vmatpush1.xpose.msra.mxu0 0.0
          %760 = vmatprep.subr.mxu0 0.0
          %761 = vmatpush1.xpose.msra.mxu0 0.0
          %762 = vmatprep.subr.mxu0 0.0
          %763 = vmatpush1.xpose.msra.mxu0 0.0
          %764 = vmatprep.subr.mxu0 0.0
          %765 = vmatpush1.xpose.msra.mxu0 0.0
          %766 = vmatprep.subr.mxu0 0.0
          %767 = vmatpush1.xpose.msra.mxu0 0.0
          %768 = vmatprep.subr.mxu0 0.0
          %769 = vmatpush1.xpose.msra.mxu0 0.0
          %770 = vmatprep.subr.mxu0 0.0
          %771 = vmatpush1.xpose.msra.mxu0 0.0
          %772 = vmatprep.subr.mxu0 0.0
          %773 = vmatpush1.xpose.msra.mxu0 0.0
          %774 = vmatprep.subr.mxu0 0.0
          %775 = vmatpush1.xpose.msra.mxu0 0.0
          %776 = vmatprep.subr.mxu0 0.0
          %777 = vmatpush1.xpose.msra.mxu0 0.0
          %778 = vmatprep.subr.mxu0 0.0
          %779 = vmatpush1.xpose.msra.mxu0 %v746
          %780 = vmatprep.subr.mxu0 0.0
          %781 = vmatpush2.xpose.msra.mxu0 0.0
          %782 = vmatprep.subr.mxu0 0.0
          %783 = vmatpush2.xpose.msra.mxu0 0.0
          %784 = vmatprep.subr.mxu0 0.0
          %785 = vmatpush2.xpose.msra.mxu0 0.0
          %786 = vmatprep.subr.mxu0 0.0
          %787 = vmatpush2.xpose.msra.mxu0 0.0
          %788 = vmatprep.subr.mxu0 0.0
          %789 = vmatpush2.xpose.msra.mxu0 0.0
          %790 = vmatprep.subr.mxu0 0.0
          %791 = vmatpush2.xpose.msra.mxu0 0.0
          %792 = vmatprep.subr.mxu0 0.0
          %793 = vmatpush2.xpose.msra.mxu0 0.0
          %794 = vmatprep.subr.mxu0 0.0
          %795 = vmatpush2.xpose.msra.mxu0 0.0
          %796 = vmatprep.subr.mxu0 0.0
          %797 = vmatpush2.xpose.msra.mxu0 0.0
          %798 = vmatprep.subr.mxu0 0.0
          %799 = vmatpush2.xpose.msra.mxu0 0.0
          %800 = vmatprep.subr.mxu0 0.0
          %801 = vmatpush2.xpose.msra.mxu0 0.0
          %802 = vmatprep.subr.mxu0 0.0
          %803 = vmatpush2.xpose.msra.mxu0 0.0
          %804 = vmatprep.subr.mxu0 0.0
          %805 = vmatpush2.xpose.msra.mxu0 0.0
          %806 = vmatprep.subr.mxu0 0.0
          %807 = vmatpush2.xpose.msra.mxu0 0.0
          %808 = vmatprep.subr.mxu0 0.0
          %809 = vmatpush2.xpose.msra.mxu0 0.0
          %810 = vmatprep.subr.mxu0 0.0
          %811 = vmatpush2.xpose.msra.mxu0 0.0
          %812 = vmatprep.mubr.f32.mxu0 0.0
          %813 = vmatmul.mubr.f32.gmra.mxu0 %v744
          %v814 = vpop.f32.mrf.mxu0
          %v815 = vadd.f32 0.0, %v814
          %v816 = vpop.f32.mrf.mxu0
          %817 = vdwg.mxu0
          %v818 = vmul.f32 %v815, %v739
          %s819 = scalar_lea.vmem [#allocation3], 16
          %v820 = vld [vmem:[%s819] sm:$0xff]
          %v821 = vand.u32 2147483647, %v818
          %v822 = vsel %vm398, %v821, 0.0
          %823 = vadd.xlane.f32.xlu0 %v822
          %v824 = vpop.xlane.xlu0 %823
          %v825 = vadd.f32 %v820, %v824
          %826 = vst.msk [vmem:[%s819] sm:$0xff] %vm482, %v825
          %s827 = scalar_lea.vmem [#allocation2], 16
          %v828 = vld [vmem:[%s827] sm:$0xff]
          %829 = vrot.lane.b32.xlu0 %v379, 112
          %v830 = vpop.permute.xlu0 %829
          %v833 = vsel %vm398, %v818, 0
          %835 = vmatprep.subr.mxu0 0.0
          %836 = vmatpush1.msra.mxu0 0.0
          %837 = vmatprep.subr.mxu0 0.0
          %838 = vmatpush1.msra.mxu0 0.0
          %839 = vmatprep.subr.mxu0 0.0
          %840 = vmatpush1.msra.mxu0 0.0
          %841 = vmatprep.subr.mxu0 0.0
          %842 = vmatpush1.msra.mxu0 0.0
          %843 = vmatprep.subr.mxu0 0.0
          %844 = vmatpush1.msra.mxu0 0.0
          %845 = vmatprep.subr.mxu0 0.0
          %846 = vmatpush1.msra.mxu0 0.0
          %847 = vmatprep.subr.mxu0 0.0
          %848 = vmatpush1.msra.mxu0 0.0
          %849 = vmatprep.subr.mxu0 0.0
          %850 = vmatpush1.msra.mxu0 0.0
          %851 = vmatprep.subr.mxu0 0.0
          %852 = vmatpush1.msra.mxu0 0.0
          %853 = vmatprep.subr.mxu0 0.0
          %854 = vmatpush1.msra.mxu0 0.0
          %855 = vmatprep.subr.mxu0 0.0
          %856 = vmatpush1.msra.mxu0 0.0
          %857 = vmatprep.subr.mxu0 0.0
          %858 = vmatpush1.msra.mxu0 0.0
          %859 = vmatprep.subr.mxu0 0.0
          %860 = vmatpush1.msra.mxu0 0.0
          %861 = vmatprep.subr.mxu0 0.0
          %862 = vmatpush1.msra.mxu0 0.0
          %863 = vmatprep.subr.mxu0 0.0
          %864 = vmatpush1.msra.mxu0 0.0
          %865 = vmatprep.subr.mxu0 0.0
          %866 = vmatpush1.msra.mxu0 %v830
          %867 = vmatprep.subr.mxu0 0.0
          %868 = vmatpush2.msra.mxu0 0.0
          %869 = vmatprep.subr.mxu0 0.0
          %870 = vmatpush2.msra.mxu0 0.0
          %871 = vmatprep.subr.mxu0 0.0
          %872 = vmatpush2.msra.mxu0 0.0
          %873 = vmatprep.subr.mxu0 0.0
          %874 = vmatpush2.msra.mxu0 0.0
          %875 = vmatprep.subr.mxu0 0.0
          %876 = vmatpush2.msra.mxu0 0.0
          %877 = vmatprep.subr.mxu0 0.0
          %878 = vmatpush2.msra.mxu0 0.0
          %879 = vmatprep.subr.mxu0 0.0
          %880 = vmatpush2.msra.mxu0 0.0
          %881 = vmatprep.subr.mxu0 0.0
          %882 = vmatpush2.msra.mxu0 0.0
          %883 = vmatprep.subr.mxu0 0.0
          %884 = vmatpush2.msra.mxu0 0.0
          %885 = vmatprep.subr.mxu0 0.0
          %886 = vmatpush2.msra.mxu0 0.0
          %887 = vmatprep.subr.mxu0 0.0
          %888 = vmatpush2.msra.mxu0 0.0
          %889 = vmatprep.subr.mxu0 0.0
          %890 = vmatpush2.msra.mxu0 0.0
          %891 = vmatprep.subr.mxu0 0.0
          %892 = vmatpush2.msra.mxu0 0.0
          %893 = vmatprep.subr.mxu0 0.0
          %894 = vmatpush2.msra.mxu0 0.0
          %895 = vmatprep.subr.mxu0 0.0
          %896 = vmatpush2.msra.mxu0 0.0
          %897 = vmatprep.subr.mxu0 0.0
          %898 = vmatpush2.msra.mxu0 0.0
          %899 = vmatprep.mubr.f32.mxu0 0.0
          %900 = vmatmul.mubr.f32.gmra.mxu0 %v833
          %v901 = vpop.f32.mrf.mxu0
          %v902 = vadd.f32 0.0, %v901
          %v903 = vpop.f32.mrf.mxu0
          %904 = vdwg.mxu0
          %v905 = vadd.f32 %v828, %v902
          %906 = vst.msk [vmem:[%s827] sm:$0xff] %vm398, %v905
          %s907 = sld [smem:[#allocation4 + $0x3]]
          %v908 = vstv %s907
          %v909 = vmul.f32 %v391, %v908
          %v910 = vmul.f32 %v909, 1.442695
          %v911 = vpow.pop %v910
          %v912 = vsel %vm388, %v911, 0.0
          %913 = vrot.lane.b32.xlu0 %v377, 104
          %v914 = vpop.permute.xlu0 %913
          %915 = vrot.lane.b32.xlu0 %v378, 104
          %v916 = vpop.permute.xlu0 %915
          %v917 = vsel %vm398, %v914, 0
          %v919 = vsel %vm398, %v916, 0
          %921 = vmatprep.subr.mxu0 0.0
          %922 = vmatpush1.xpose.msra.mxu0 0.0
          %923 = vmatprep.subr.mxu0 0.0
          %924 = vmatpush1.xpose.msra.mxu0 0.0
          %925 = vmatprep.subr.mxu0 0.0
          %926 = vmatpush1.xpose.msra.mxu0 0.0
          %927 = vmatprep.subr.mxu0 0.0
          %928 = vmatpush1.xpose.msra.mxu0 0.0
          %929 = vmatprep.subr.mxu0 0.0
          %930 = vmatpush1.xpose.msra.mxu0 0.0
          %931 = vmatprep.subr.mxu0 0.0
          %932 = vmatpush1.xpose.msra.mxu0 0.0
          %933 = vmatprep.subr.mxu0 0.0
          %934 = vmatpush1.xpose.msra.mxu0 0.0
          %935 = vmatprep.subr.mxu0 0.0
          %936 = vmatpush1.xpose.msra.mxu0 0.0
          %937 = vmatprep.subr.mxu0 0.0
          %938 = vmatpush1.xpose.msra.mxu0 0.0
          %939 = vmatprep.subr.mxu0 0.0
          %940 = vmatpush1.xpose.msra.mxu0 0.0
          %941 = vmatprep.subr.mxu0 0.0
          %942 = vmatpush1.xpose.msra.mxu0 0.0
          %943 = vmatprep.subr.mxu0 0.0
          %944 = vmatpush1.xpose.msra.mxu0 0.0
          %945 = vmatprep.subr.mxu0 0.0
          %946 = vmatpush1.xpose.msra.mxu0 0.0
          %947 = vmatprep.subr.mxu0 0.0
          %948 = vmatpush1.xpose.msra.mxu0 0.0
          %949 = vmatprep.subr.mxu0 0.0
          %950 = vmatpush1.xpose.msra.mxu0 0.0
          %951 = vmatprep.subr.mxu0 0.0
          %952 = vmatpush1.xpose.msra.mxu0 %v919
          %953 = vmatprep.subr.mxu0 0.0
          %954 = vmatpush2.xpose.msra.mxu0 0.0
          %955 = vmatprep.subr.mxu0 0.0
          %956 = vmatpush2.xpose.msra.mxu0 0.0
          %957 = vmatprep.subr.mxu0 0.0
          %958 = vmatpush2.xpose.msra.mxu0 0.0
          %959 = vmatprep.subr.mxu0 0.0
          %960 = vmatpush2.xpose.msra.mxu0 0.0
          %961 = vmatprep.subr.mxu0 0.0
          %962 = vmatpush2.xpose.msra.mxu0 0.0
          %963 = vmatprep.subr.mxu0 0.0
          %964 = vmatpush2.xpose.msra.mxu0 0.0
          %965 = vmatprep.subr.mxu0 0.0
          %966 = vmatpush2.xpose.msra.mxu0 0.0
          %967 = vmatprep.subr.mxu0 0.0
          %968 = vmatpush2.xpose.msra.mxu0 0.0
          %969 = vmatprep.subr.mxu0 0.0
          %970 = vmatpush2.xpose.msra.mxu0 0.0
          %971 = vmatprep.subr.mxu0 0.0
          %972 = vmatpush2.xpose.msra.mxu0 0.0
          %973 = vmatprep.subr.mxu0 0.0
          %974 = vmatpush2.xpose.msra.mxu0 0.0
          %975 = vmatprep.subr.mxu0 0.0
          %976 = vmatpush2.xpose.msra.mxu0 0.0
          %977 = vmatprep.subr.mxu0 0.0
          %978 = vmatpush2.xpose.msra.mxu0 0.0
          %979 = vmatprep.subr.mxu0 0.0
          %980 = vmatpush2.xpose.msra.mxu0 0.0
          %981 = vmatprep.subr.mxu0 0.0
          %982 = vmatpush2.xpose.msra.mxu0 0.0
          %983 = vmatprep.subr.mxu0 0.0
          %984 = vmatpush2.xpose.msra.mxu0 0.0
          %985 = vmatprep.mubr.f32.mxu0 0.0
          %986 = vmatmul.mubr.f32.gmra.mxu0 %v917
          %v987 = vpop.f32.mrf.mxu0
          %v988 = vadd.f32 0.0, %v987
          %v989 = vpop.f32.mrf.mxu0
          %990 = vdwg.mxu0
          %v991 = vmul.f32 %v988, %v912
          %s992 = scalar_lea.vmem [#allocation3], 24
          %v993 = vld [vmem:[%s992] sm:$0xff]
          %v994 = vand.u32 2147483647, %v991
          %v995 = vsel %vm398, %v994, 0.0
          %996 = vadd.xlane.f32.xlu0 %v995
          %v997 = vpop.xlane.xlu0 %996
          %v998 = vadd.f32 %v993, %v997
          %999 = vst.msk [vmem:[%s992] sm:$0xff] %vm482, %v998
          %s1000 = scalar_lea.vmem [#allocation2], 24
          %v1001 = vld [vmem:[%s1000] sm:$0xff]
          %1002 = vrot.lane.b32.xlu0 %v379, 104
          %v1003 = vpop.permute.xlu0 %1002
          %v1006 = vsel %vm398, %v991, 0
          %1008 = vmatprep.subr.mxu0 0.0
          %1009 = vmatpush1.msra.mxu0 0.0
          %1010 = vmatprep.subr.mxu0 0.0
          %1011 = vmatpush1.msra.mxu0 0.0
          %1012 = vmatprep.subr.mxu0 0.0
          %1013 = vmatpush1.msra.mxu0 0.0
          %1014 = vmatprep.subr.mxu0 0.0
          %1015 = vmatpush1.msra.mxu0 0.0
          %1016 = vmatprep.subr.mxu0 0.0
          %1017 = vmatpush1.msra.mxu0 0.0
          %1018 = vmatprep.subr.mxu0 0.0
          %1019 = vmatpush1.msra.mxu0 0.0
          %1020 = vmatprep.subr.mxu0 0.0
          %1021 = vmatpush1.msra.mxu0 0.0
          %1022 = vmatprep.subr.mxu0 0.0
          %1023 = vmatpush1.msra.mxu0 0.0
          %1024 = vmatprep.subr.mxu0 0.0
          %1025 = vmatpush1.msra.mxu0 0.0
          %1026 = vmatprep.subr.mxu0 0.0
          %1027 = vmatpush1.msra.mxu0 0.0
          %1028 = vmatprep.subr.mxu0 0.0
          %1029 = vmatpush1.msra.mxu0 0.0
          %1030 = vmatprep.subr.mxu0 0.0
          %1031 = vmatpush1.msra.mxu0 0.0
          %1032 = vmatprep.subr.mxu0 0.0
          %1033 = vmatpush1.msra.mxu0 0.0
          %1034 = vmatprep.subr.mxu0 0.0
          %1035 = vmatpush1.msra.mxu0 0.0
          %1036 = vmatprep.subr.mxu0 0.0
          %1037 = vmatpush1.msra.mxu0 0.0
          %1038 = vmatprep.subr.mxu0 0.0
          %1039 = vmatpush1.msra.mxu0 %v1003
          %1040 = vmatprep.subr.mxu0 0.0
          %1041 = vmatpush2.msra.mxu0 0.0
          %1042 = vmatprep.subr.mxu0 0.0
          %1043 = vmatpush2.msra.mxu0 0.0
          %1044 = vmatprep.subr.mxu0 0.0
          %1045 = vmatpush2.msra.mxu0 0.0
          %1046 = vmatprep.subr.mxu0 0.0
          %1047 = vmatpush2.msra.mxu0 0.0
          %1048 = vmatprep.subr.mxu0 0.0
          %1049 = vmatpush2.msra.mxu0 0.0
          %1050 = vmatprep.subr.mxu0 0.0
          %1051 = vmatpush2.msra.mxu0 0.0
          %1052 = vmatprep.subr.mxu0 0.0
          %1053 = vmatpush2.msra.mxu0 0.0
          %1054 = vmatprep.subr.mxu0 0.0
          %1055 = vmatpush2.msra.mxu0 0.0
          %1056 = vmatprep.subr.mxu0 0.0
          %1057 = vmatpush2.msra.mxu0 0.0
          %1058 = vmatprep.subr.mxu0 0.0
          %1059 = vmatpush2.msra.mxu0 0.0
          %1060 = vmatprep.subr.mxu0 0.0
          %1061 = vmatpush2.msra.mxu0 0.0
          %1062 = vmatprep.subr.mxu0 0.0
          %1063 = vmatpush2.msra.mxu0 0.0
          %1064 = vmatprep.subr.mxu0 0.0
          %1065 = vmatpush2.msra.mxu0 0.0
          %1066 = vmatprep.subr.mxu0 0.0
          %1067 = vmatpush2.msra.mxu0 0.0
          %1068 = vmatprep.subr.mxu0 0.0
          %1069 = vmatpush2.msra.mxu0 0.0
          %1070 = vmatprep.subr.mxu0 0.0
          %1071 = vmatpush2.msra.mxu0 0.0
          %1072 = vmatprep.mubr.f32.mxu0 0.0
          %1073 = vmatmul.mubr.f32.gmra.mxu0 %v1006
          %v1074 = vpop.f32.mrf.mxu0
          %v1075 = vadd.f32 0.0, %v1074
          %v1076 = vpop.f32.mrf.mxu0
          %1077 = vdwg.mxu0
          %v1078 = vadd.f32 %v1001, %v1075
          %1079 = vst.msk [vmem:[%s1000] sm:$0xff] %vm398, %v1078
        $region52: #{multiscale_retention_forward.4} parent=39 // pred_fallthru
          _
        // Predicated region
        $region53: #{multiscale_retention_forward.4} parent=39 // pred_check
          %p1080 = pneg %p358
        $region54: #{multiscale_retention_forward.4} parent=39 // pred_check_branch
          %1082 = sbr.rel (%p1080) target = $region56
        $region55: #{multiscale_retention_forward.4} parent=39 // pred_region
          %v1083 = vld [vmem:[%s348] sm:$0xff]
          %v1084 = vld [vmem:[#allocation3] sm:$0xff]
          %v1085 = vmax.f32 %v1084, 1.0
          %v1086 = vmin.f32 %v1085, 50000.0
          %v1087 = vld [vmem:[#allocation2] sm:$0xff]
          %1089 = vset.pattern.permute.xlu0 0
          %1090 = vperm.xlu0 %1089, %v1086
          %v1091 = vpop.permute.xlu0 %1090
          %v1093 = vrcp.pop %v1091
          %v1094 = vmul.f32 %v1087, %v1093
          %v1095 = vmul.f32 %v1094, %v1094
          %vm1096 = vcmask 64512
          %v1097 = vsel %vm1096, %v1095, 0.0
          %1098 = vadd.xlane.f32.xlu0 %v1097
          %v1099 = vpop.xlane.xlu0 %1098
          %v1100 = vrcp.pop 8.0
          %v1101 = vmul.f32 %v1099, %v1100
          %v1102 = vadd.f32 %v1101, 1e-06
          %v1103 = vrsqrt.pop %v1102
          %v1104 = vmul.f32 %v1094, %v1103
          %v1105 = vxor.u32 %v1083, 2147483648
          %v1106 = vmul.f32 %v1105, 1.442695
          %v1107 = vpow.pop %v1106
          %v1108 = vadd.f32 %v1107, 1.0
          %v1109 = vrcp.pop %v1108
          %v1110 = vmul.f32 1.0, %v1109
          %v1111 = vmul.f32 %v1083, %v1110
          %v1112 = vmul.f32 %v1111, %v1104
          %s1113 = scalar_lea.vmem [#allocation3], 8
          %v1114 = vld [vmem:[%s1113] sm:$0xff]
          %v1115 = vmax.f32 %v1114, 1.0
          %v1116 = vmin.f32 %v1115, 50000.0
          %s1117 = scalar_lea.vmem [#allocation2], 8
          %v1118 = vld [vmem:[%s1117] sm:$0xff]
          %1120 = vset.pattern.permute.xlu0 0
          %1121 = vperm.xlu0 %1120, %v1116
          %v1122 = vpop.permute.xlu0 %1121
          %v1124 = vrcp.pop %v1122
          %v1125 = vmul.f32 %v1118, %v1124
          %v1126 = vmul.f32 %v1125, %v1125
          %v1127 = vsel %vm1096, %v1126, 0.0
          %1128 = vadd.xlane.f32.xlu0 %v1127
          %v1129 = vpop.xlane.xlu0 %1128
          %v1130 = vmul.f32 %v1129, %v1100
          %v1131 = vadd.f32 %v1130, 1e-06
          %v1132 = vrsqrt.pop %v1131
          %v1133 = vmul.f32 %v1125, %v1132
          %1135 = vrot.lane.b32.xlu0 %v1133, 8
          %v1136 = vpop.permute.xlu0 %1135
          %v1138 = vmul.f32 %v1111, %v1136
          %s1139 = scalar_lea.vmem [#allocation3], 16
          %v1140 = vld [vmem:[%s1139] sm:$0xff]
          %v1141 = vmax.f32 %v1140, 1.0
          %v1142 = vmin.f32 %v1141, 50000.0
          %s1143 = scalar_lea.vmem [#allocation2], 16
          %v1144 = vld [vmem:[%s1143] sm:$0xff]
          %1146 = vset.pattern.permute.xlu0 0
          %1147 = vperm.xlu0 %1146, %v1142
          %v1148 = vpop.permute.xlu0 %1147
          %v1150 = vrcp.pop %v1148
          %v1151 = vmul.f32 %v1144, %v1150
          %v1152 = vmul.f32 %v1151, %v1151
          %v1153 = vsel %vm1096, %v1152, 0.0
          %1154 = vadd.xlane.f32.xlu0 %v1153
          %v1155 = vpop.xlane.xlu0 %1154
          %v1156 = vmul.f32 %v1155, %v1100
          %v1157 = vadd.f32 %v1156, 1e-06
          %v1158 = vrsqrt.pop %v1157
          %v1159 = vmul.f32 %v1151, %v1158
          %1161 = vrot.lane.b32.xlu0 %v1159, 16
          %v1162 = vpop.permute.xlu0 %1161
          %v1164 = vmul.f32 %v1111, %v1162
          %s1165 = scalar_lea.vmem [#allocation3], 24
          %v1166 = vld [vmem:[%s1165] sm:$0xff]
          %v1167 = vmax.f32 %v1166, 1.0
          %v1168 = vmin.f32 %v1167, 50000.0
          %s1169 = scalar_lea.vmem [#allocation2], 24
          %v1170 = vld [vmem:[%s1169] sm:$0xff]
          %1172 = vset.pattern.permute.xlu0 0
          %1173 = vperm.xlu0 %1172, %v1168
          %v1174 = vpop.permute.xlu0 %1173
          %v1176 = vrcp.pop %v1174
          %v1177 = vmul.f32 %v1170, %v1176
          %v1178 = vmul.f32 %v1177, %v1177
          %v1179 = vsel %vm1096, %v1178, 0.0
          %1180 = vadd.xlane.f32.xlu0 %v1179
          %v1181 = vpop.xlane.xlu0 %1180
          %v1182 = vmul.f32 %v1181, %v1100
          %v1183 = vadd.f32 %v1182, 1e-06
          %v1184 = vrsqrt.pop %v1183
          %v1185 = vmul.f32 %v1177, %v1184
          %1187 = vrot.lane.b32.xlu0 %v1185, 24
          %v1188 = vpop.permute.xlu0 %1187
          %v1190 = vmul.f32 %v1111, %v1188
          %v1191 = vsel %vm1096, %v1112, %v1138
          %vm1192 = vcmask 130048
          %v1193 = vsel %vm1192, %v1191, %v1164
          %vm1194 = vcmask 195584
          %v1195 = vsel %vm1194, %v1193, %v1190
          %vm1196 = vcmask 261120
          %1197 = vst.msk [vmem:[%s355] sm:$0xff] %vm1196, %v1195
        $region56: #{multiscale_retention_forward.4} parent=39 // pred_fallthru
          _
        %p1198 = scmp.lt.s32.totalorder %s22, 1
        %s1199 = scalar_select %p1198, %s22, 1
        %p1200 = scmp.lt.s32.totalorder %s23, 0
        %s1201 = scalar_select %p1200, %s23, 0
        %s1202 = sadd.s32 %s1201, %s1199
        %s1203 = smul.addr %s1202, 8
        %s1204 = scalar_lea.vmem %s5, %s1203
        // Predicated region
        $region57: #{multiscale_retention_forward.4} parent=39 // pred_check
          %p1205 = pneg %p189
        $region58: #{multiscale_retention_forward.4} parent=39 // pred_check_branch
          %1207 = sbr.rel (%p1205) target = $region60
        $region59: #{multiscale_retention_forward.4} parent=39 // pred_region
          _
        $region60: #{multiscale_retention_forward.4} parent=39 // pred_fallthru
          _
      $region40: #{multiscale_retention_forward.4} parent=5 // pred_fallthru
        _
      %p1208 = scmp.le.s32.totalorder 2, %s12
      // Predicated region
      $region61: #{multiscale_retention_forward.4} parent=5 // pred_check
        %p1209 = pneg %p1208
      $region62: #{multiscale_retention_forward.4} parent=5 // pred_check_branch
        %1211 = sbr.rel (%p1209) target = $region64
      $region63: #{multiscale_retention_forward.4} parent=5 // pred_region
        %s1212 = ssub.s32 %s12, 2
        // Predicated region
        $region65: #{multiscale_retention_forward.4} parent=63 // pred_check
          %p1213 = pneg %p195
        $region66: #{multiscale_retention_forward.4} parent=63 // pred_check_branch
          %1215 = sbr.rel (%p1213) target = $region68
        $region67: #{multiscale_retention_forward.4} parent=63 // pred_region
          %p1216 = scmp.lt.s32.totalorder %s25, 1
          %s1217 = scalar_select %p1216, %s25, 1
          %p1218 = scmp.lt.s32.totalorder %s26, 0
          %s1219 = scalar_select %p1218, %s26, 0
          %s1220 = sadd.s32 %s1219, %s1217
          %s1221 = smul.addr %s1220, 8
          %s1222 = scalar_lea.vmem %s5, %s1221
        $region68: #{multiscale_retention_forward.4} parent=63 // pred_fallthru
          _
      $region64: #{multiscale_retention_forward.4} parent=5 // pred_fallthru
        _
    $region6: #{multiscale_retention_forward.4} parent=1 // loop_footer
      %s16 = sadd.s32 1, %s12
    $region7: #{multiscale_retention_forward.4} parent=1 // loop_footer_branch
      %11 = sbr.rel target = $region3
    $region8: #{multiscale_retention_forward.4} parent=1 // loop_exit
      _
    %1223 = vsyncpa [#allocation5], 1
    %s1224 = scalar_lea.sflag [#allocation5], 1
    %1225 = vsyncpa %s1224, 1

</llo_original>
